<compile_context>
chip_gen: v6e
topology: v6e:2x2x1
jax: 0.10.0
libtpu: 0.0.40
codegen_flags: <defaults>
</compile_context>

<pallas_src>
import numpy as np
import jax
import jax.numpy as jnp
from jax.experimental import pallas as pl
from jax.experimental.pallas import tpu as pltpu

DILATIONS = (1, 3, 9)
K_RU = 7                      # residual-unit conv kernel size

# MXU operand dtype. float32 keeps the demo numerically tight vs. the XLA f32
# reference; set to jnp.bfloat16 on v6e/v7x for ~2x MXU throughput and half the
# operand bytes (accumulation stays f32 via preferred_element_type).
MXU_DTYPE = jnp.float32


def _elu(x):
    # ELU(alpha=1). exp() only sees the clamped-negative side -> never overflows.
    return jnp.where(x > 0, x, jnp.exp(jnp.minimum(x, 0.0)) - 1.0)


# ---------------------------- fused Pallas kernel ----------------------------

def make_encoder_block_kernel(T, C, S, PM):
    """One grid step = one batch element, full EncoderBlock forward.

    PM is the (8-aligned) causal halo size; scratch xp_ref holds
    [PM zero rows | T activation rows] so every stage's causal left padding is
    just a shifted read of the same VMEM buffer.
    """
    T_out = T // S

    def kernel(x_ref, w1s_ref, b1s_ref, w2s_ref, b2s_ref, wd_ref, bd_ref,
               o_ref, xp_ref, tap_ref, dtap_ref):
        # ---- causal padding lives in VMEM: zero the halo once, copy input ----
        xp_ref[0:PM, :] = jnp.zeros((PM, C), jnp.float32)
        xp_ref[PM:PM + T, :] = x_ref[0]

        # ---- 3 x (ResidualUnit + ELU), activation resident in VMEM ----
        for i, d in enumerate(DILATIONS):           # unrolled at trace time
            xp = xp_ref[...]                        # (PM + T, C)
            x_cur = xp[PM:PM + T, :]
            # Pack the 7 dilated shifts side-by-side along lanes -> (T, 7C),
            # so the dilated conv is a single deep-contraction matmul.
            for k in range(K_RU):
                s0 = PM - (K_RU - 1 - k) * d        # reads into the zero halo
                tap_ref[:, k * C:(k + 1) * C] = xp[s0:s0 + T, :]
            h = jnp.dot(tap_ref[...].astype(MXU_DTYPE),
                        w1s_ref[i].astype(MXU_DTYPE),
                        preferred_element_type=jnp.float32)
            h = _elu(h + b1s_ref[i])                # ELU inside ResidualUnit
            y = jnp.dot(h.astype(MXU_DTYPE), w2s_ref[i].astype(MXU_DTYPE),
                        preferred_element_type=jnp.float32) + b2s_ref[i]
            xp_ref[PM:PM + T, :] = _elu(x_cur + y)  # residual + block ELU

        # ---- strided causal conv (kernel=2S, stride=S): im2col via strided
        #      sublane reads, then one matmul (T_out, 2S*C) @ (2S*C, 2C) ----
        for k in range(2 * S):
            s0 = PM - (2 * S - 1) + k
            dtap_ref[:, k * C:(k + 1) * C] = xp_ref[pl.ds(s0, T_out, stride=S), :]
        o_ref[0] = (jnp.dot(dtap_ref[...].astype(MXU_DTYPE),
                            wd_ref[...].astype(MXU_DTYPE),
                            preferred_element_type=jnp.float32) + bd_ref[...])

    return kernel


# ---------------------------- wrapper (glue) ----------------------------

def encoder_block_forward(x_nct, params, stride):
    """PyTorch-equivalent forward. x_nct: (B, C, T) -> (B, 2C, T // stride)."""
    B, C, T = x_nct.shape
    S = stride
    assert T % S == 0, "demo assumes T divisible by stride"
    T_out = T // S
    x = jnp.transpose(x_nct, (0, 2, 1))                       # NCT -> (B, T, C)

    # Weight repacking (tiny, done once outside the kernel).
    w1s = jnp.stack([jnp.transpose(ru["w1"], (2, 1, 0)).reshape(K_RU * C, C)
                     for ru in params["res_units"]])          # (3, 7C, C)
    b1s = jnp.stack([ru["b1"].reshape(1, C) for ru in params["res_units"]])
    w2s = jnp.stack([jnp.transpose(ru["w2"][:, :, 0])
                     for ru in params["res_units"]])          # (3, C, C)
    b2s = jnp.stack([ru["b2"].reshape(1, C) for ru in params["res_units"]])
    wd = jnp.transpose(params["down_w"], (2, 1, 0)).reshape(2 * S * C, 2 * C)
    bd = params["down_b"].reshape(1, 2 * C)

    # Halo covers the deepest causal pad (6*9=54) and the downsample pad (2S-1),
    # rounded up to a multiple of 8 so the live data region is sublane-aligned.
    PM = ((max(6 * max(DILATIONS), 2 * S - 1) + 7) // 8) * 8

    kernel = make_encoder_block_kernel(T, C, S, PM)
    # TODO(synk): for long audio (large T) add a T-tile grid axis with a PM-row
    # left halo so per-step VMEM stays well under v7x's 64 MiB.
    out = pl.pallas_call(
        kernel,
        out_shape=jax.ShapeDtypeStruct((B, T_out, 2 * C), jnp.float32),
        grid=(B,),
        in_specs=[
            pl.BlockSpec((1, T, C), lambda b: (b, 0, 0)),           # x
            pl.BlockSpec((3, K_RU * C, C), lambda b: (0, 0, 0)),    # stacked w1
            pl.BlockSpec((3, 1, C), lambda b: (0, 0, 0)),           # b1
            pl.BlockSpec((3, C, C), lambda b: (0, 0, 0)),           # w2 (1x1)
            pl.BlockSpec((3, 1, C), lambda b: (0, 0, 0)),           # b2
            pl.BlockSpec((2 * S * C, 2 * C), lambda b: (0, 0)),     # stacked wd
            pl.BlockSpec((1, 2 * C), lambda b: (0, 0)),             # bd
        ],
        out_specs=pl.BlockSpec((1, T_out, 2 * C), lambda b: (b, 0, 0)),
        scratch_shapes=[
            pltpu.VMEM((PM + T, C), jnp.float32),         # padded activation
            pltpu.VMEM((T, K_RU * C), jnp.float32),       # residual tap stack
            pltpu.VMEM((T_out, 2 * S * C), jnp.float32),  # downsample im2col
        ],
        compiler_params=pltpu.CompilerParams(
            dimension_semantics=("parallel",),            # batch across TCs (v7x)
            vmem_limit_bytes=32 * 1024 * 1024),
    )(x, w1s, b1s, w2s, b2s, wd, bd)
    return jnp.transpose(out, (0, 2, 1))                  # back to NCT


# ---------------------------- params & reference ----------------------------

def init_params(key, half_channels, stride):
    C = half_channels

    def conv_init(k, cout, cin, ksize):
        kw, kb = jax.random.split(k)
        bound = 1.0 / np.sqrt(cin * ksize)
        w = jax.random.uniform(kw, (cout, cin, ksize), jnp.float32, -bound, bound)
        b = jax.random.uniform(kb, (cout,), jnp.float32, -bound, bound)
        return w, b

    keys = jax.random.split(key, 4)
    res_units = []
    for i in range(3):
        k1, k2 = jax.random.split(keys[i])
        w1, b1 = conv_init(k1, C, C, 7)
        w2, b2 = conv_init(k2, C, C, 1)
        res_units.append(dict(w1=w1, b1=b1, w2=w2, b2=b2))
    dw, db = conv_init(keys[3], 2 * C, C, 2 * stride)
    return dict(res_units=res_units, down_w=dw, down_b=db)


def _causal_conv1d_ref(x_nct, w, b, stride=1, dilation=1):
    K = w.shape[-1]
    pad = dilation * (K - 1)
    xp = jnp.pad(x_nct, ((0, 0), (0, 0), (pad, 0)))
    y = jax.lax.conv_general_dilated(
        xp, w, window_strides=(stride,), padding="VALID",
        rhs_dilation=(dilation,), dimension_numbers=("NCH", "OIH", "NCH"))
    return y + b[None, :, None]


def encoder_block_ref(x_nct, params, stride):
    x = x_nct
    for d, ru in zip(DILATIONS, params["res_units"]):
        h = _causal_conv1d_ref(x, ru["w1"], ru["b1"], dilation=d)
        h = _elu(h)
        h = _causal_conv1d_ref(h, ru["w2"], ru["b2"])    # kernel_size=1 conv
        x = x + h
        x = _elu(x)
    return _causal_conv1d_ref(x, params["down_w"], params["down_b"], stride=stride)


# ---------------------------- main ----------------------------

if __name__ == "__main__":
    out_channels = 8          # EncoderBlock(out_channels=8, stride=2)
    stride = 2
    B, C, T = 2, out_channels // 2, 16

    key = jax.random.PRNGKey(0)
    kx, kp = jax.random.split(key)
    x = jax.random.normal(kx, (B, C, T), jnp.float32)    # PyTorch NCT input
    params = init_params(kp, C, stride)

    y = encoder_block_forward(x, params, stride)
    y = jax.block_until_ready(y)

    assert y.shape == (B, out_channels, T // stride), y.shape
    y_ref = encoder_block_ref(x, params, stride)
    np.testing.assert_allclose(np.asarray(y), np.asarray(y_ref), atol=1e-2, rtol=1e-2)

    print("KERNEL_OK")
</pallas_src>

<mosaic_0001>
module attributes {stable_mosaic.version = 11 : i64} {
  func.func @kernel(%arg0: i32, %arg1: memref<1x16x4xf32, #tpu.memory_space<vmem>>, %arg2: memref<3x28x4xf32, #tpu.memory_space<vmem>>, %arg3: memref<3x1x4xf32, #tpu.memory_space<vmem>>, %arg4: memref<3x4x4xf32, #tpu.memory_space<vmem>>, %arg5: memref<3x1x4xf32, #tpu.memory_space<vmem>>, %arg6: memref<16x8xf32, #tpu.memory_space<vmem>>, %arg7: memref<1x8xf32, #tpu.memory_space<vmem>>, %arg8: memref<1x8x8xf32, #tpu.memory_space<vmem>>, %arg9: memref<72x4xf32, #tpu.memory_space<vmem>>, %arg10: memref<16x28xf32, #tpu.memory_space<vmem>>, %arg11: memref<8x16xf32, #tpu.memory_space<vmem>>) attributes {dimension_semantics = [#tpu.dimension_semantics<parallel>], iteration_bounds = array<i64: 2>, scalar_prefetch = 0 : i64, scratch_operands = 3 : i64, tpu.core_type = #tpu.core_type<tc>, window_params = [{transform_indices = @transform_0, window_bounds = array<i64: 1, 16, 4>}, {pipeline_mode = #tpu.pipeline_mode<synchronous>, transform_indices = @transform_1, window_bounds = array<i64: 3, 28, 4>}, {pipeline_mode = #tpu.pipeline_mode<synchronous>, transform_indices = @transform_2, window_bounds = array<i64: 3, 1, 4>}, {pipeline_mode = #tpu.pipeline_mode<synchronous>, transform_indices = @transform_3, window_bounds = array<i64: 3, 4, 4>}, {pipeline_mode = #tpu.pipeline_mode<synchronous>, transform_indices = @transform_4, window_bounds = array<i64: 3, 1, 4>}, {pipeline_mode = #tpu.pipeline_mode<synchronous>, transform_indices = @transform_5, window_bounds = array<i64: 16, 8>}, {pipeline_mode = #tpu.pipeline_mode<synchronous>, transform_indices = @transform_6, window_bounds = array<i64: 1, 8>}, {transform_indices = @transform_7, window_bounds = array<i64: 1, 8, 8>}]} {
    %cst = arith.constant 0.000000e+00 : f32
    %0 = vector.broadcast %cst : f32 to vector<56x4xf32>
    %c0 = arith.constant 0 : index
    %c0_0 = arith.constant 0 : index
    %1 = vector.load %arg9[%c0, %c0_0] : memref<72x4xf32, #tpu.memory_space<vmem>>, vector<56x4xf32>
    tpu.vector_store %arg9[%c0, %c0_0], %0 {strides = array<i32>} : memref<72x4xf32, #tpu.memory_space<vmem>>, vector<56x4xf32>,
    %c0_1 = arith.constant 0 : index
    %c0_2 = arith.constant 0 : index
    %c0_3 = arith.constant 0 : index
    %2 = vector.load %arg1[%c0_1, %c0_2, %c0_3] : memref<1x16x4xf32, #tpu.memory_space<vmem>>, vector<1x16x4xf32>
    %3 = vector.shape_cast %2 : vector<1x16x4xf32> to vector<16x4xf32>
    %c56 = arith.constant 56 : index
    %c0_4 = arith.constant 0 : index
    %4 = vector.load %arg9[%c56, %c0_4] : memref<72x4xf32, #tpu.memory_space<vmem>>, vector<16x4xf32>
    tpu.vector_store %arg9[%c56, %c0_4], %3 {strides = array<i32>} : memref<72x4xf32, #tpu.memory_space<vmem>>, vector<16x4xf32>,
    %c0_5 = arith.constant 0 : index
    %c0_6 = arith.constant 0 : index
    %5 = vector.load %arg9[%c0_5, %c0_6] : memref<72x4xf32, #tpu.memory_space<vmem>>, vector<72x4xf32>
    %6 = vector.extract_strided_slice %5 {offsets = [56, 0], sizes = [16, 4], strides = [1, 1]} : vector<72x4xf32> to vector<16x4xf32>
    %7 = vector.extract_strided_slice %5 {offsets = [50, 0], sizes = [16, 4], strides = [1, 1]} : vector<72x4xf32> to vector<16x4xf32>
    %c0_7 = arith.constant 0 : index
    %c0_8 = arith.constant 0 : index
    %8 = vector.load %arg10[%c0_7, %c0_8] : memref<16x28xf32, #tpu.memory_space<vmem>>, vector<16x4xf32>
    tpu.vector_store %arg10[%c0_7, %c0_8], %7 {strides = array<i32>} : memref<16x28xf32, #tpu.memory_space<vmem>>, vector<16x4xf32>,
    %9 = vector.extract_strided_slice %5 {offsets = [51, 0], sizes = [16, 4], strides = [1, 1]} : vector<72x4xf32> to vector<16x4xf32>
    %c0_9 = arith.constant 0 : index
    %c4 = arith.constant 4 : index
    %10 = vector.load %arg10[%c0_9, %c4] : memref<16x28xf32, #tpu.memory_space<vmem>>, vector<16x4xf32>
    tpu.vector_store %arg10[%c0_9, %c4], %9 {strides = array<i32>} : memref<16x28xf32, #tpu.memory_space<vmem>>, vector<16x4xf32>,
    %11 = vector.extract_strided_slice %5 {offsets = [52, 0], sizes = [16, 4], strides = [1, 1]} : vector<72x4xf32> to vector<16x4xf32>
    %c0_10 = arith.constant 0 : index
    %c8 = arith.constant 8 : index
    %12 = vector.load %arg10[%c0_10, %c8] : memref<16x28xf32, #tpu.memory_space<vmem>>, vector<16x4xf32>
    tpu.vector_store %arg10[%c0_10, %c8], %11 {strides = array<i32>} : memref<16x28xf32, #tpu.memory_space<vmem>>, vector<16x4xf32>,
    %13 = vector.extract_strided_slice %5 {offsets = [53, 0], sizes = [16, 4], strides = [1, 1]} : vector<72x4xf32> to vector<16x4xf32>
    %c0_11 = arith.constant 0 : index
    %c12 = arith.constant 12 : index
    %14 = vector.load %arg10[%c0_11, %c12] : memref<16x28xf32, #tpu.memory_space<vmem>>, vector<16x4xf32>
    tpu.vector_store %arg10[%c0_11, %c12], %13 {strides = array<i32>} : memref<16x28xf32, #tpu.memory_space<vmem>>, vector<16x4xf32>,
    %15 = vector.extract_strided_slice %5 {offsets = [54, 0], sizes = [16, 4], strides = [1, 1]} : vector<72x4xf32> to vector<16x4xf32>
    %c0_12 = arith.constant 0 : index
    %c16 = arith.constant 16 : index
    %16 = vector.load %arg10[%c0_12, %c16] : memref<16x28xf32, #tpu.memory_space<vmem>>, vector<16x4xf32>
    tpu.vector_store %arg10[%c0_12, %c16], %15 {strides = array<i32>} : memref<16x28xf32, #tpu.memory_space<vmem>>, vector<16x4xf32>,
    %17 = vector.extract_strided_slice %5 {offsets = [55, 0], sizes = [16, 4], strides = [1, 1]} : vector<72x4xf32> to vector<16x4xf32>
    %c0_13 = arith.constant 0 : index
    %c20 = arith.constant 20 : index
    %18 = vector.load %arg10[%c0_13, %c20] : memref<16x28xf32, #tpu.memory_space<vmem>>, vector<16x4xf32>
    tpu.vector_store %arg10[%c0_13, %c20], %17 {strides = array<i32>} : memref<16x28xf32, #tpu.memory_space<vmem>>, vector<16x4xf32>,
    %19 = vector.extract_strided_slice %5 {offsets = [56, 0], sizes = [16, 4], strides = [1, 1]} : vector<72x4xf32> to vector<16x4xf32>
    %c0_14 = arith.constant 0 : index
    %c24 = arith.constant 24 : index
    %20 = vector.load %arg10[%c0_14, %c24] : memref<16x28xf32, #tpu.memory_space<vmem>>, vector<16x4xf32>
    tpu.vector_store %arg10[%c0_14, %c24], %19 {strides = array<i32>} : memref<16x28xf32, #tpu.memory_space<vmem>>, vector<16x4xf32>,
    %c0_15 = arith.constant 0 : index
    %c0_16 = arith.constant 0 : index
    %21 = vector.load %arg10[%c0_15, %c0_16] : memref<16x28xf32, #tpu.memory_space<vmem>>, vector<16x28xf32>
    %c0_17 = arith.constant 0 : index
    %c0_18 = arith.constant 0 : index
    %c0_19 = arith.constant 0 : index
    %22 = vector.load %arg2[%c0_17, %c0_18, %c0_19] : memref<3x28x4xf32, #tpu.memory_space<vmem>>, vector<1x28x4xf32>
    %23 = vector.shape_cast %22 : vector<1x28x4xf32> to vector<28x4xf32>
    %cst_20 = arith.constant dense<0.000000e+00> : vector<16x4xf32>
    %24 = tpu.matmul %21, %23, %cst_20 {dimension_numbers = #tpu.dot_dimension_numbers<[1], [0], [0], [1], [0, 0, 1, 1], [], []>} : vector<16x28xf32>, vector<28x4xf32>, vector<16x4xf32> -> vector<16x4xf32>
    %c0_21 = arith.constant 0 : index
    %c0_22 = arith.constant 0 : index
    %c0_23 = arith.constant 0 : index
    %25 = vector.load %arg3[%c0_21, %c0_22, %c0_23] : memref<3x1x4xf32, #tpu.memory_space<vmem>>, vector<1x1x4xf32>
    %26 = vector.shape_cast %25 : vector<1x1x4xf32> to vector<1x4xf32>
    %27 = vector.broadcast %26 : vector<1x4xf32> to vector<16x4xf32>
    %28 = arith.addf %24, %27 : vector<16x4xf32>
    %cst_24 = arith.constant 0.000000e+00 : f32
    %29 = vector.broadcast %cst_24 : f32 to vector<16x4xf32>
    %30 = arith.cmpf ogt, %28, %29 : vector<16x4xf32>
    %cst_25 = arith.constant 0.000000e+00 : f32
    %31 = vector.broadcast %cst_25 : f32 to vector<16x4xf32>
    %32 = arith.minimumf %28, %31 : vector<16x4xf32>
    %33 = math.exp %32 : vector<16x4xf32>
    %cst_26 = arith.constant 1.000000e+00 : f32
    %34 = vector.broadcast %cst_26 : f32 to vector<16x4xf32>
    %35 = arith.subf %33, %34 : vector<16x4xf32>
    %36 = arith.select %30, %28, %35 : vector<16x4xi1>, vector<16x4xf32>
    %c0_27 = arith.constant 0 : index
    %c0_28 = arith.constant 0 : index
    %c0_29 = arith.constant 0 : index
    %37 = vector.load %arg4[%c0_27, %c0_28, %c0_29] : memref<3x4x4xf32, #tpu.memory_space<vmem>>, vector<1x4x4xf32>
    %38 = vector.shape_cast %37 : vector<1x4x4xf32> to vector<4x4xf32>
    %cst_30 = arith.constant dense<0.000000e+00> : vector<16x4xf32>
    %39 = tpu.matmul %36, %38, %cst_30 {dimension_numbers = #tpu.dot_dimension_numbers<[1], [0], [0], [1], [0, 0, 1, 1], [], []>} : vector<16x4xf32>, vector<4x4xf32>, vector<16x4xf32> -> vector<16x4xf32>
    %c0_31 = arith.constant 0 : index
    %c0_32 = arith.constant 0 : index
    %c0_33 = arith.constant 0 : index
    %40 = vector.load %arg5[%c0_31, %c0_32, %c0_33] : memref<3x1x4xf32, #tpu.memory_space<vmem>>, vector<1x1x4xf32>
    %41 = vector.shape_cast %40 : vector<1x1x4xf32> to vector<1x4xf32>
    %42 = vector.broadcast %41 : vector<1x4xf32> to vector<16x4xf32>
    %43 = arith.addf %39, %42 : vector<16x4xf32>
    %44 = arith.addf %6, %43 : vector<16x4xf32>
    %cst_34 = arith.constant 0.000000e+00 : f32
    %45 = vector.broadcast %cst_34 : f32 to vector<16x4xf32>
    %46 = arith.cmpf ogt, %44, %45 : vector<16x4xf32>
    %cst_35 = arith.constant 0.000000e+00 : f32
    %47 = vector.broadcast %cst_35 : f32 to vector<16x4xf32>
    %48 = arith.minimumf %44, %47 : vector<16x4xf32>
    %49 = math.exp %48 : vector<16x4xf32>
    %cst_36 = arith.constant 1.000000e+00 : f32
    %50 = vector.broadcast %cst_36 : f32 to vector<16x4xf32>
    %51 = arith.subf %49, %50 : vector<16x4xf32>
    %52 = arith.select %46, %44, %51 : vector<16x4xi1>, vector<16x4xf32>
    %c56_37 = arith.constant 56 : index
    %c0_38 = arith.constant 0 : index
    %53 = vector.load %arg9[%c56_37, %c0_38] : memref<72x4xf32, #tpu.memory_space<vmem>>, vector<16x4xf32>
    tpu.vector_store %arg9[%c56_37, %c0_38], %52 {strides = array<i32>} : memref<72x4xf32, #tpu.memory_space<vmem>>, vector<16x4xf32>,
    %c0_39 = arith.constant 0 : index
    %c0_40 = arith.constant 0 : index
    %54 = vector.load %arg9[%c0_39, %c0_40] : memref<72x4xf32, #tpu.memory_space<vmem>>, vector<72x4xf32>
    %55 = vector.extract_strided_slice %54 {offsets = [56, 0], sizes = [16, 4], strides = [1, 1]} : vector<72x4xf32> to vector<16x4xf32>
    %56 = vector.extract_strided_slice %54 {offsets = [38, 0], sizes = [16, 4], strides = [1, 1]} : vector<72x4xf32> to vector<16x4xf32>
    %c0_41 = arith.constant 0 : index
    %c0_42 = arith.constant 0 : index
    %57 = vector.load %arg10[%c0_41, %c0_42] : memref<16x28xf32, #tpu.memory_space<vmem>>, vector<16x4xf32>
    tpu.vector_store %arg10[%c0_41, %c0_42], %56 {strides = array<i32>} : memref<16x28xf32, #tpu.memory_space<vmem>>, vector<16x4xf32>,
    %58 = vector.extract_strided_slice %54 {offsets = [41, 0], sizes = [16, 4], strides = [1, 1]} : vector<72x4xf32> to vector<16x4xf32>
    %c0_43 = arith.constant 0 : index
    %c4_44 = arith.constant 4 : index
    %59 = vector.load %arg10[%c0_43, %c4_44] : memref<16x28xf32, #tpu.memory_space<vmem>>, vector<16x4xf32>
    tpu.vector_store %arg10[%c0_43, %c4_44], %58 {strides = array<i32>} : memref<16x28xf32, #tpu.memory_space<vmem>>, vector<16x4xf32>,
    %60 = vector.extract_strided_slice %54 {offsets = [44, 0], sizes = [16, 4], strides = [1, 1]} : vector<72x4xf32> to vector<16x4xf32>
    %c0_45 = arith.constant 0 : index
    %c8_46 = arith.constant 8 : index
    %61 = vector.load %arg10[%c0_45, %c8_46] : memref<16x28xf32, #tpu.memory_space<vmem>>, vector<16x4xf32>
    tpu.vector_store %arg10[%c0_45, %c8_46], %60 {strides = array<i32>} : memref<16x28xf32, #tpu.memory_space<vmem>>, vector<16x4xf32>,
    %62 = vector.extract_strided_slice %54 {offsets = [47, 0], sizes = [16, 4], strides = [1, 1]} : vector<72x4xf32> to vector<16x4xf32>
    %c0_47 = arith.constant 0 : index
    %c12_48 = arith.constant 12 : index
    %63 = vector.load %arg10[%c0_47, %c12_48] : memref<16x28xf32, #tpu.memory_space<vmem>>, vector<16x4xf32>
    tpu.vector_store %arg10[%c0_47, %c12_48], %62 {strides = array<i32>} : memref<16x28xf32, #tpu.memory_space<vmem>>, vector<16x4xf32>,
    %64 = vector.extract_strided_slice %54 {offsets = [50, 0], sizes = [16, 4], strides = [1, 1]} : vector<72x4xf32> to vector<16x4xf32>
    %c0_49 = arith.constant 0 : index
    %c16_50 = arith.constant 16 : index
    %65 = vector.load %arg10[%c0_49, %c16_50] : memref<16x28xf32, #tpu.memory_space<vmem>>, vector<16x4xf32>
    tpu.vector_store %arg10[%c0_49, %c16_50], %64 {strides = array<i32>} : memref<16x28xf32, #tpu.memory_space<vmem>>, vector<16x4xf32>,
    %66 = vector.extract_strided_slice %54 {offsets = [53, 0], sizes = [16, 4], strides = [1, 1]} : vector<72x4xf32> to vector<16x4xf32>
    %c0_51 = arith.constant 0 : index
    %c20_52 = arith.constant 20 : index
    %67 = vector.load %arg10[%c0_51, %c20_52] : memref<16x28xf32, #tpu.memory_space<vmem>>, vector<16x4xf32>
    tpu.vector_store %arg10[%c0_51, %c20_52], %66 {strides = array<i32>} : memref<16x28xf32, #tpu.memory_space<vmem>>, vector<16x4xf32>,
    %68 = vector.extract_strided_slice %54 {offsets = [56, 0], sizes = [16, 4], strides = [1, 1]} : vector<72x4xf32> to vector<16x4xf32>
    %c0_53 = arith.constant 0 : index
    %c24_54 = arith.constant 24 : index
    %69 = vector.load %arg10[%c0_53, %c24_54] : memref<16x28xf32, #tpu.memory_space<vmem>>, vector<16x4xf32>
    tpu.vector_store %arg10[%c0_53, %c24_54], %68 {strides = array<i32>} : memref<16x28xf32, #tpu.memory_space<vmem>>, vector<16x4xf32>,
    %c0_55 = arith.constant 0 : index
    %c0_56 = arith.constant 0 : index
    %70 = vector.load %arg10[%c0_55, %c0_56] : memref<16x28xf32, #tpu.memory_space<vmem>>, vector<16x28xf32>
    %c1 = arith.constant 1 : index
    %c0_57 = arith.constant 0 : index
    %c0_58 = arith.constant 0 : index
    %71 = vector.load %arg2[%c1, %c0_57, %c0_58] : memref<3x28x4xf32, #tpu.memory_space<vmem>>, vector<1x28x4xf32>
    %72 = vector.shape_cast %71 : vector<1x28x4xf32> to vector<28x4xf32>
    %cst_59 = arith.constant dense<0.000000e+00> : vector<16x4xf32>
    %73 = tpu.matmul %70, %72, %cst_59 {dimension_numbers = #tpu.dot_dimension_numbers<[1], [0], [0], [1], [0, 0, 1, 1], [], []>} : vector<16x28xf32>, vector<28x4xf32>, vector<16x4xf32> -> vector<16x4xf32>
    %c1_60 = arith.constant 1 : index
    %c0_61 = arith.constant 0 : index
    %c0_62 = arith.constant 0 : index
    %74 = vector.load %arg3[%c1_60, %c0_61, %c0_62] : memref<3x1x4xf32, #tpu.memory_space<vmem>>, vector<1x1x4xf32>
    %75 = vector.shape_cast %74 : vector<1x1x4xf32> to vector<1x4xf32>
    %76 = vector.broadcast %75 : vector<1x4xf32> to vector<16x4xf32>
    %77 = arith.addf %73, %76 : vector<16x4xf32>
    %cst_63 = arith.constant 0.000000e+00 : f32
    %78 = vector.broadcast %cst_63 : f32 to vector<16x4xf32>
    %79 = arith.cmpf ogt, %77, %78 : vector<16x4xf32>
    %cst_64 = arith.constant 0.000000e+00 : f32
    %80 = vector.broadcast %cst_64 : f32 to vector<16x4xf32>
    %81 = arith.minimumf %77, %80 : vector<16x4xf32>
    %82 = math.exp %81 : vector<16x4xf32>
    %cst_65 = arith.constant 1.000000e+00 : f32
    %83 = vector.broadcast %cst_65 : f32 to vector<16x4xf32>
    %84 = arith.subf %82, %83 : vector<16x4xf32>
    %85 = arith.select %79, %77, %84 : vector<16x4xi1>, vector<16x4xf32>
    %c1_66 = arith.constant 1 : index
    %c0_67 = arith.constant 0 : index
    %c0_68 = arith.constant 0 : index
    %86 = vector.load %arg4[%c1_66, %c0_67, %c0_68] : memref<3x4x4xf32, #tpu.memory_space<vmem>>, vector<1x4x4xf32>
    %87 = vector.shape_cast %86 : vector<1x4x4xf32> to vector<4x4xf32>
    %cst_69 = arith.constant dense<0.000000e+00> : vector<16x4xf32>
    %88 = tpu.matmul %85, %87, %cst_69 {dimension_numbers = #tpu.dot_dimension_numbers<[1], [0], [0], [1], [0, 0, 1, 1], [], []>} : vector<16x4xf32>, vector<4x4xf32>, vector<16x4xf32> -> vector<16x4xf32>
    %c1_70 = arith.constant 1 : index
    %c0_71 = arith.constant 0 : index
    %c0_72 = arith.constant 0 : index
    %89 = vector.load %arg5[%c1_70, %c0_71, %c0_72] : memref<3x1x4xf32, #tpu.memory_space<vmem>>, vector<1x1x4xf32>
    %90 = vector.shape_cast %89 : vector<1x1x4xf32> to vector<1x4xf32>
    %91 = vector.broadcast %90 : vector<1x4xf32> to vector<16x4xf32>
    %92 = arith.addf %88, %91 : vector<16x4xf32>
    %93 = arith.addf %55, %92 : vector<16x4xf32>
    %cst_73 = arith.constant 0.000000e+00 : f32
    %94 = vector.broadcast %cst_73 : f32 to vector<16x4xf32>
    %95 = arith.cmpf ogt, %93, %94 : vector<16x4xf32>
    %cst_74 = arith.constant 0.000000e+00 : f32
    %96 = vector.broadcast %cst_74 : f32 to vector<16x4xf32>
    %97 = arith.minimumf %93, %96 : vector<16x4xf32>
    %98 = math.exp %97 : vector<16x4xf32>
    %cst_75 = arith.constant 1.000000e+00 : f32
    %99 = vector.broadcast %cst_75 : f32 to vector<16x4xf32>
    %100 = arith.subf %98, %99 : vector<16x4xf32>
    %101 = arith.select %95, %93, %100 : vector<16x4xi1>, vector<16x4xf32>
    %c56_76 = arith.constant 56 : index
    %c0_77 = arith.constant 0 : index
    %102 = vector.load %arg9[%c56_76, %c0_77] : memref<72x4xf32, #tpu.memory_space<vmem>>, vector<16x4xf32>
    tpu.vector_store %arg9[%c56_76, %c0_77], %101 {strides = array<i32>} : memref<72x4xf32, #tpu.memory_space<vmem>>, vector<16x4xf32>,
    %c0_78 = arith.constant 0 : index
    %c0_79 = arith.constant 0 : index
    %103 = vector.load %arg9[%c0_78, %c0_79] : memref<72x4xf32, #tpu.memory_space<vmem>>, vector<72x4xf32>
    %104 = vector.extract_strided_slice %103 {offsets = [56, 0], sizes = [16, 4], strides = [1, 1]} : vector<72x4xf32> to vector<16x4xf32>
    %105 = vector.extract_strided_slice %103 {offsets = [2, 0], sizes = [16, 4], strides = [1, 1]} : vector<72x4xf32> to vector<16x4xf32>
    %c0_80 = arith.constant 0 : index
    %c0_81 = arith.constant 0 : index
    %106 = vector.load %arg10[%c0_80, %c0_81] : memref<16x28xf32, #tpu.memory_space<vmem>>, vector<16x4xf32>
    tpu.vector_store %arg10[%c0_80, %c0_81], %105 {strides = array<i32>} : memref<16x28xf32, #tpu.memory_space<vmem>>, vector<16x4xf32>,
    %107 = vector.extract_strided_slice %103 {offsets = [11, 0], sizes = [16, 4], strides = [1, 1]} : vector<72x4xf32> to vector<16x4xf32>
    %c0_82 = arith.constant 0 : index
    %c4_83 = arith.constant 4 : index
    %108 = vector.load %arg10[%c0_82, %c4_83] : memref<16x28xf32, #tpu.memory_space<vmem>>, vector<16x4xf32>
    tpu.vector_store %arg10[%c0_82, %c4_83], %107 {strides = array<i32>} : memref<16x28xf32, #tpu.memory_space<vmem>>, vector<16x4xf32>,
    %109 = vector.extract_strided_slice %103 {offsets = [20, 0], sizes = [16, 4], strides = [1, 1]} : vector<72x4xf32> to vector<16x4xf32>
    %c0_84 = arith.constant 0 : index
    %c8_85 = arith.constant 8 : index
    %110 = vector.load %arg10[%c0_84, %c8_85] : memref<16x28xf32, #tpu.memory_space<vmem>>, vector<16x4xf32>
    tpu.vector_store %arg10[%c0_84, %c8_85], %109 {strides = array<i32>} : memref<16x28xf32, #tpu.memory_space<vmem>>, vector<16x4xf32>,
    %111 = vector.extract_strided_slice %103 {offsets = [29, 0], sizes = [16, 4], strides = [1, 1]} : vector<72x4xf32> to vector<16x4xf32>
    %c0_86 = arith.constant 0 : index
    %c12_87 = arith.constant 12 : index
    %112 = vector.load %arg10[%c0_86, %c12_87] : memref<16x28xf32, #tpu.memory_space<vmem>>, vector<16x4xf32>
    tpu.vector_store %arg10[%c0_86, %c12_87], %111 {strides = array<i32>} : memref<16x28xf32, #tpu.memory_space<vmem>>, vector<16x4xf32>,
    %113 = vector.extract_strided_slice %103 {offsets = [38, 0], sizes = [16, 4], strides = [1, 1]} : vector<72x4xf32> to vector<16x4xf32>
    %c0_88 = arith.constant 0 : index
    %c16_89 = arith.constant 16 : index
    %114 = vector.load %arg10[%c0_88, %c16_89] : memref<16x28xf32, #tpu.memory_space<vmem>>, vector<16x4xf32>
    tpu.vector_store %arg10[%c0_88, %c16_89], %113 {strides = array<i32>} : memref<16x28xf32, #tpu.memory_space<vmem>>, vector<16x4xf32>,
    %115 = vector.extract_strided_slice %103 {offsets = [47, 0], sizes = [16, 4], strides = [1, 1]} : vector<72x4xf32> to vector<16x4xf32>
    %c0_90 = arith.constant 0 : index
    %c20_91 = arith.constant 20 : index
    %116 = vector.load %arg10[%c0_90, %c20_91] : memref<16x28xf32, #tpu.memory_space<vmem>>, vector<16x4xf32>
    tpu.vector_store %arg10[%c0_90, %c20_91], %115 {strides = array<i32>} : memref<16x28xf32, #tpu.memory_space<vmem>>, vector<16x4xf32>,
    %117 = vector.extract_strided_slice %103 {offsets = [56, 0], sizes = [16, 4], strides = [1, 1]} : vector<72x4xf32> to vector<16x4xf32>
    %c0_92 = arith.constant 0 : index
    %c24_93 = arith.constant 24 : index
    %118 = vector.load %arg10[%c0_92, %c24_93] : memref<16x28xf32, #tpu.memory_space<vmem>>, vector<16x4xf32>
    tpu.vector_store %arg10[%c0_92, %c24_93], %117 {strides = array<i32>} : memref<16x28xf32, #tpu.memory_space<vmem>>, vector<16x4xf32>,
    %c0_94 = arith.constant 0 : index
    %c0_95 = arith.constant 0 : index
    %119 = vector.load %arg10[%c0_94, %c0_95] : memref<16x28xf32, #tpu.memory_space<vmem>>, vector<16x28xf32>
    %c2 = arith.constant 2 : index
    %c0_96 = arith.constant 0 : index
    %c0_97 = arith.constant 0 : index
    %120 = vector.load %arg2[%c2, %c0_96, %c0_97] : memref<3x28x4xf32, #tpu.memory_space<vmem>>, vector<1x28x4xf32>
    %121 = vector.shape_cast %120 : vector<1x28x4xf32> to vector<28x4xf32>
    %cst_98 = arith.constant dense<0.000000e+00> : vector<16x4xf32>
    %122 = tpu.matmul %119, %121, %cst_98 {dimension_numbers = #tpu.dot_dimension_numbers<[1], [0], [0], [1], [0, 0, 1, 1], [], []>} : vector<16x28xf32>, vector<28x4xf32>, vector<16x4xf32> -> vector<16x4xf32>
    %c2_99 = arith.constant 2 : index
    %c0_100 = arith.constant 0 : index
    %c0_101 = arith.constant 0 : index
    %123 = vector.load %arg3[%c2_99, %c0_100, %c0_101] : memref<3x1x4xf32, #tpu.memory_space<vmem>>, vector<1x1x4xf32>
    %124 = vector.shape_cast %123 : vector<1x1x4xf32> to vector<1x4xf32>
    %125 = vector.broadcast %124 : vector<1x4xf32> to vector<16x4xf32>
    %126 = arith.addf %122, %125 : vector<16x4xf32>
    %cst_102 = arith.constant 0.000000e+00 : f32
    %127 = vector.broadcast %cst_102 : f32 to vector<16x4xf32>
    %128 = arith.cmpf ogt, %126, %127 : vector<16x4xf32>
    %cst_103 = arith.constant 0.000000e+00 : f32
    %129 = vector.broadcast %cst_103 : f32 to vector<16x4xf32>
    %130 = arith.minimumf %126, %129 : vector<16x4xf32>
    %131 = math.exp %130 : vector<16x4xf32>
    %cst_104 = arith.constant 1.000000e+00 : f32
    %132 = vector.broadcast %cst_104 : f32 to vector<16x4xf32>
    %133 = arith.subf %131, %132 : vector<16x4xf32>
    %134 = arith.select %128, %126, %133 : vector<16x4xi1>, vector<16x4xf32>
    %c2_105 = arith.constant 2 : index
    %c0_106 = arith.constant 0 : index
    %c0_107 = arith.constant 0 : index
    %135 = vector.load %arg4[%c2_105, %c0_106, %c0_107] : memref<3x4x4xf32, #tpu.memory_space<vmem>>, vector<1x4x4xf32>
    %136 = vector.shape_cast %135 : vector<1x4x4xf32> to vector<4x4xf32>
    %cst_108 = arith.constant dense<0.000000e+00> : vector<16x4xf32>
    %137 = tpu.matmul %134, %136, %cst_108 {dimension_numbers = #tpu.dot_dimension_numbers<[1], [0], [0], [1], [0, 0, 1, 1], [], []>} : vector<16x4xf32>, vector<4x4xf32>, vector<16x4xf32> -> vector<16x4xf32>
    %c2_109 = arith.constant 2 : index
    %c0_110 = arith.constant 0 : index
    %c0_111 = arith.constant 0 : index
    %138 = vector.load %arg5[%c2_109, %c0_110, %c0_111] : memref<3x1x4xf32, #tpu.memory_space<vmem>>, vector<1x1x4xf32>
    %139 = vector.shape_cast %138 : vector<1x1x4xf32> to vector<1x4xf32>
    %140 = vector.broadcast %139 : vector<1x4xf32> to vector<16x4xf32>
    %141 = arith.addf %137, %140 : vector<16x4xf32>
    %142 = arith.addf %104, %141 : vector<16x4xf32>
    %cst_112 = arith.constant 0.000000e+00 : f32
    %143 = vector.broadcast %cst_112 : f32 to vector<16x4xf32>
    %144 = arith.cmpf ogt, %142, %143 : vector<16x4xf32>
    %cst_113 = arith.constant 0.000000e+00 : f32
    %145 = vector.broadcast %cst_113 : f32 to vector<16x4xf32>
    %146 = arith.minimumf %142, %145 : vector<16x4xf32>
    %147 = math.exp %146 : vector<16x4xf32>
    %cst_114 = arith.constant 1.000000e+00 : f32
    %148 = vector.broadcast %cst_114 : f32 to vector<16x4xf32>
    %149 = arith.subf %147, %148 : vector<16x4xf32>
    %150 = arith.select %144, %142, %149 : vector<16x4xi1>, vector<16x4xf32>
    %c56_115 = arith.constant 56 : index
    %c0_116 = arith.constant 0 : index
    %151 = vector.load %arg9[%c56_115, %c0_116] : memref<72x4xf32, #tpu.memory_space<vmem>>, vector<16x4xf32>
    tpu.vector_store %arg9[%c56_115, %c0_116], %150 {strides = array<i32>} : memref<72x4xf32, #tpu.memory_space<vmem>>, vector<16x4xf32>,
    %c53 = arith.constant 53 : index
    %c0_117 = arith.constant 0 : index
    %152 = tpu.strided_load %arg9[%c53, %c0_117] {strides = array<i32: 2, 1>} : memref<72x4xf32, #tpu.memory_space<vmem>>, vector<8x4xf32>
    %c0_118 = arith.constant 0 : index
    %c0_119 = arith.constant 0 : index
    %153 = vector.load %arg11[%c0_118, %c0_119] : memref<8x16xf32, #tpu.memory_space<vmem>>, vector<8x4xf32>
    tpu.vector_store %arg11[%c0_118, %c0_119], %152 {strides = array<i32>} : memref<8x16xf32, #tpu.memory_space<vmem>>, vector<8x4xf32>,
    %c54 = arith.constant 54 : index
    %c0_120 = arith.constant 0 : index
    %154 = tpu.strided_load %arg9[%c54, %c0_120] {strides = array<i32: 2, 1>} : memref<72x4xf32, #tpu.memory_space<vmem>>, vector<8x4xf32>
    %c0_121 = arith.constant 0 : index
    %c4_122 = arith.constant 4 : index
    %155 = vector.load %arg11[%c0_121, %c4_122] : memref<8x16xf32, #tpu.memory_space<vmem>>, vector<8x4xf32>
    tpu.vector_store %arg11[%c0_121, %c4_122], %154 {strides = array<i32>} : memref<8x16xf32, #tpu.memory_space<vmem>>, vector<8x4xf32>,
    %c55 = arith.constant 55 : index
    %c0_123 = arith.constant 0 : index
    %156 = tpu.strided_load %arg9[%c55, %c0_123] {strides = array<i32: 2, 1>} : memref<72x4xf32, #tpu.memory_space<vmem>>, vector<8x4xf32>
    %c0_124 = arith.constant 0 : index
    %c8_125 = arith.constant 8 : index
    %157 = vector.load %arg11[%c0_124, %c8_125] : memref<8x16xf32, #tpu.memory_space<vmem>>, vector<8x4xf32>
    tpu.vector_store %arg11[%c0_124, %c8_125], %156 {strides = array<i32>} : memref<8x16xf32, #tpu.memory_space<vmem>>, vector<8x4xf32>,
    %c56_126 = arith.constant 56 : index
    %c0_127 = arith.constant 0 : index
    %158 = tpu.strided_load %arg9[%c56_126, %c0_127] {strides = array<i32: 2, 1>} : memref<72x4xf32, #tpu.memory_space<vmem>>, vector<8x4xf32>
    %c0_128 = arith.constant 0 : index
    %c12_129 = arith.constant 12 : index
    %159 = vector.load %arg11[%c0_128, %c12_129] : memref<8x16xf32, #tpu.memory_space<vmem>>, vector<8x4xf32>
    tpu.vector_store %arg11[%c0_128, %c12_129], %158 {strides = array<i32>} : memref<8x16xf32, #tpu.memory_space<vmem>>, vector<8x4xf32>,
    %c0_130 = arith.constant 0 : index
    %c0_131 = arith.constant 0 : index
    %160 = vector.load %arg11[%c0_130, %c0_131] : memref<8x16xf32, #tpu.memory_space<vmem>>, vector<8x16xf32>
    %c0_132 = arith.constant 0 : index
    %c0_133 = arith.constant 0 : index
    %161 = vector.load %arg6[%c0_132, %c0_133] : memref<16x8xf32, #tpu.memory_space<vmem>>, vector<16x8xf32>
    %cst_134 = arith.constant dense<0.000000e+00> : vector<8x8xf32>
    %162 = tpu.matmul %160, %161, %cst_134 {dimension_numbers = #tpu.dot_dimension_numbers<[1], [0], [0], [1], [0, 0, 1, 1], [], []>} : vector<8x16xf32>, vector<16x8xf32>, vector<8x8xf32> -> vector<8x8xf32>
    %c0_135 = arith.constant 0 : index
    %c0_136 = arith.constant 0 : index
    %163 = vector.load %arg7[%c0_135, %c0_136] : memref<1x8xf32, #tpu.memory_space<vmem>>, vector<1x8xf32>
    %164 = vector.broadcast %163 : vector<1x8xf32> to vector<8x8xf32>
    %165 = arith.addf %162, %164 : vector<8x8xf32>
    %c0_137 = arith.constant 0 : index
    %c0_138 = arith.constant 0 : index
    %c0_139 = arith.constant 0 : index
    %166 = vector.load %arg8[%c0_137, %c0_138, %c0_139] : memref<1x8x8xf32, #tpu.memory_space<vmem>>, vector<1x8x8xf32>
    %167 = vector.shape_cast %166 : vector<1x8x8xf32> to vector<8x8xf32>
    %168 = vector.shape_cast %165 : vector<8x8xf32> to vector<1x8x8xf32>
    tpu.vector_store %arg8[%c0_137, %c0_138, %c0_139], %168 {strides = array<i32>} : memref<1x8x8xf32, #tpu.memory_space<vmem>>, vector<1x8x8xf32>,
    return
  }
  func.func @transform_0(%arg0: i32) -> (i32, i32, i32) {
    %c0_i32 = arith.constant 0 : i32
    %c0_i32_0 = arith.constant 0 : i32
    %c0_i32_1 = arith.constant 0 : i32
    return %arg0, %c0_i32, %c0_i32_0 : i32, i32, i32
  }
  func.func @transform_1(%arg0: i32) -> (i32, i32, i32) {
    %c0_i32 = arith.constant 0 : i32
    %c0_i32_0 = arith.constant 0 : i32
    %c0_i32_1 = arith.constant 0 : i32
    %c0_i32_2 = arith.constant 0 : i32
    return %c0_i32, %c0_i32_0, %c0_i32_1 : i32, i32, i32
  }
  func.func @transform_2(%arg0: i32) -> (i32, i32, i32) {
    %c0_i32 = arith.constant 0 : i32
    %c0_i32_0 = arith.constant 0 : i32
    %c0_i32_1 = arith.constant 0 : i32
    %c0_i32_2 = arith.constant 0 : i32
    return %c0_i32, %c0_i32_0, %c0_i32_1 : i32, i32, i32
  }
  func.func @transform_3(%arg0: i32) -> (i32, i32, i32) {
    %c0_i32 = arith.constant 0 : i32
    %c0_i32_0 = arith.constant 0 : i32
    %c0_i32_1 = arith.constant 0 : i32
    %c0_i32_2 = arith.constant 0 : i32
    return %c0_i32, %c0_i32_0, %c0_i32_1 : i32, i32, i32
  }
  func.func @transform_4(%arg0: i32) -> (i32, i32, i32) {
    %c0_i32 = arith.constant 0 : i32
    %c0_i32_0 = arith.constant 0 : i32
    %c0_i32_1 = arith.constant 0 : i32
    %c0_i32_2 = arith.constant 0 : i32
    return %c0_i32, %c0_i32_0, %c0_i32_1 : i32, i32, i32
  }
  func.func @transform_5(%arg0: i32) -> (i32, i32) {
    %c0_i32 = arith.constant 0 : i32
    %c0_i32_0 = arith.constant 0 : i32
    %c0_i32_1 = arith.constant 0 : i32
    return %c0_i32, %c0_i32_0 : i32, i32
  }
  func.func @transform_6(%arg0: i32) -> (i32, i32) {
    %c0_i32 = arith.constant 0 : i32
    %c0_i32_0 = arith.constant 0 : i32
    %c0_i32_1 = arith.constant 0 : i32
    return %c0_i32, %c0_i32_0 : i32, i32
  }
  func.func @transform_7(%arg0: i32) -> (i32, i32, i32) {
    %c0_i32 = arith.constant 0 : i32
    %c0_i32_0 = arith.constant 0 : i32
    %c0_i32_1 = arith.constant 0 : i32
    return %arg0, %c0_i32, %c0_i32_0 : i32, i32, i32
  }
}

</mosaic_0001>

<llo_original>
// kernel: tpu_custom_call.1
$region0: #{tpu_custom_call.1}
  #allocation0 [shape = 'u32[]', space=smem, size = 0x4, offset = 0x4, fixed_abs, tag = 'smem constant byte address 0x4 - core index']
  #allocation1 [shape = 'u32[144,128]{1,0:T(1,128)}', space=vmem, size = 0x12000, scoped, tag = 'internal scratch']
  #allocation2 [shape = 'f32[72,4]{1,0:T(8,128)}', space=vmem, size = 0x9000, scoped, tag = 'scratch operand']
  #allocation3 [shape = 'f32[16,28]{1,0:T(8,128)}', space=vmem, size = 0x2000, scoped, tag = 'scratch operand']
  #allocation4 [shape = 'f32[8,16]{1,0:T(8,128)}', space=vmem, size = 0x1000, scoped, tag = 'scratch operand']
  %s0 = inlined_call_operand.vmem [shape: f32[2,16,4], index: 0, kind: input, shape index: {}]
  %s1 = inlined_call_operand.vmem [shape: f32[3,28,4], index: 1, kind: input, shape index: {}]
  %s2 = inlined_call_operand.vmem [shape: f32[3,1,4], index: 2, kind: input, shape index: {}]
  %s3 = inlined_call_operand.vmem [shape: f32[3,4,4], index: 3, kind: input, shape index: {}]
  %s4 = inlined_call_operand.vmem [shape: f32[3,1,4], index: 4, kind: input, shape index: {}]
  %s5 = inlined_call_operand.vmem [shape: f32[16,8], index: 5, kind: input, shape index: {}]
  %s6 = inlined_call_operand.vmem [shape: f32[1,8], index: 6, kind: input, shape index: {}]
  %s7 = inlined_call_operand.hbm [shape: f32[2,8,8], index: 7, kind: output, shape index: {}]
  %s8 = sld [smem:[#allocation0]]
  $region61: #{tpu_custom_call.1} parent=0
    _
  %s10 = ssub.s32 1, %s8
  %s11 = scalar_select 0, %s10, %s8
  $region1: #{tpu_custom_call.1} parent=0
    #allocation5 [shape = 'u8[8192]{0}', space=vmem, size = 0x2000, scoped, tag = 'output window, operand 0']
    #allocation6 [shape = 's32[2]{0}', space=sflag, size = 0x8, scoped, tag = 'scoped memory for tpu_custom_call.1']
    %12 = vsyncpa [#allocation6], 0
    %s13 = scalar_lea.sflag [#allocation6], 1
    %14 = vsyncpa %s13, 0
    loop: start=0, step=1, limit=4
    $region2: #{tpu_custom_call.1} parent=1 // loop_pre_header
      _
    $region3: #{tpu_custom_call.1} parent=1 // loop_header
      %s16 = sphi 0, %s20
      %p17 = scmp.ge.s32.totalorder %s16, 4
      %s26 = sphi 0, %s28
      %s29 = sphi 0, %s26
      %s30 = sphi 0, %s29
      %s46 = sphi 0, %s30
      %s50 = sphi 0, %s50
      %s52 = sphi 0, %s50
      %s53 = sphi 0, %s52
      %s67 = sphi 0, %s53
      %s71 = sphi 0, %s71
      %s73 = sphi 0, %s71
      %s74 = sphi 0, %s73
      %s88 = sphi 0, %s74
      %s92 = sphi 0, %s92
      %s94 = sphi 0, %s92
      %s95 = sphi 0, %s94
      %s109 = sphi 0, %s95
      %s113 = sphi 0, %s113
      %s115 = sphi 0, %s113
      %s116 = sphi 0, %s115
      %s130 = sphi 0, %s116
      %s134 = sphi 0, %s134
      %s136 = sphi 0, %s134
      %s137 = sphi 0, %s136
      %s151 = sphi 0, %s137
      %s155 = sphi 0, %s155
      %s157 = sphi 0, %s155
      %s158 = sphi 0, %s157
      %s172 = sphi 0, %s158
      %s178 = sphi 0, %s180
      %s181 = sphi 0, %s178
      %s182 = sphi 0, %s181
      %s198 = sphi 0, %s182
    $region4: #{tpu_custom_call.1} parent=1 // loop_header_branch
      %19 = sbr.rel (%p17) target = $region8
    $region5: #{tpu_custom_call.1} parent=1 // loop_body
      %s21 = ssub.s32 %s16, 1
      %s22 = ssub.s32 %s16, 2
      %s23 = sadd.s32 %s16, 1
      %s24 = ssub.s32 %s16, %s23
      %p25 = scmp.eq.s32.totalorder %s24, 0
      %s27 = sadd.s32 %s26, 1
      %s28 = scalar_select %p25, %s26, %s27
      %p31 = pneg %p25
      %p32 = scmp.eq.s32.totalorder %s16, 1
      %p33 = por %p31, %p32
      %p34 = scmp.ne.s32.totalorder %s26, %s29
      %p35 = scmp.eq.s32.totalorder %s16, 0
      %p36 = por %p34, %p35
      %p37 = scmp.ne.s32.totalorder %s26, %s29
      %p38 = scmp.eq.s32.totalorder %s21, 1
      %p39 = por %p37, %p38
      %p40 = scmp.ne.s32.totalorder %s29, %s30
      %p41 = scmp.eq.s32.totalorder %s21, 0
      %p42 = por %p40, %p41
      %p43 = scmp.ne.s32.totalorder %s29, %s30
      %p44 = scmp.eq.s32.totalorder %s22, 1
      %p45 = por %p43, %p44
      %p47 = scmp.ne.s32.totalorder %s30, %s46
      %p48 = scmp.eq.s32.totalorder %s22, 0
      %p49 = por %p47, %p48
      %s51 = sadd.s32 %s50, 1
      %p54 = scmp.eq.s32.totalorder %s16, 1
      %p55 = scmp.ne.s32.totalorder %s50, %s52
      %p56 = scmp.eq.s32.totalorder %s16, 0
      %p57 = por %p55, %p56
      %p58 = scmp.ne.s32.totalorder %s50, %s52
      %p59 = scmp.eq.s32.totalorder %s21, 1
      %p60 = por %p58, %p59
      %p61 = scmp.ne.s32.totalorder %s52, %s53
      %p62 = scmp.eq.s32.totalorder %s21, 0
      %p63 = por %p61, %p62
      %p64 = scmp.ne.s32.totalorder %s52, %s53
      %p65 = scmp.eq.s32.totalorder %s22, 1
      %p66 = por %p64, %p65
      %p68 = scmp.ne.s32.totalorder %s53, %s67
      %p69 = scmp.eq.s32.totalorder %s22, 0
      %p70 = por %p68, %p69
      %s72 = sadd.s32 %s71, 1
      %p75 = scmp.eq.s32.totalorder %s16, 1
      %p76 = scmp.ne.s32.totalorder %s71, %s73
      %p77 = scmp.eq.s32.totalorder %s16, 0
      %p78 = por %p76, %p77
      %p79 = scmp.ne.s32.totalorder %s71, %s73
      %p80 = scmp.eq.s32.totalorder %s21, 1
      %p81 = por %p79, %p80
      %p82 = scmp.ne.s32.totalorder %s73, %s74
      %p83 = scmp.eq.s32.totalorder %s21, 0
      %p84 = por %p82, %p83
      %p85 = scmp.ne.s32.totalorder %s73, %s74
      %p86 = scmp.eq.s32.totalorder %s22, 1
      %p87 = por %p85, %p86
      %p89 = scmp.ne.s32.totalorder %s74, %s88
      %p90 = scmp.eq.s32.totalorder %s22, 0
      %p91 = por %p89, %p90
      %s93 = sadd.s32 %s92, 1
      %p96 = scmp.eq.s32.totalorder %s16, 1
      %p97 = scmp.ne.s32.totalorder %s92, %s94
      %p98 = scmp.eq.s32.totalorder %s16, 0
      %p99 = por %p97, %p98
      %p100 = scmp.ne.s32.totalorder %s92, %s94
      %p101 = scmp.eq.s32.totalorder %s21, 1
      %p102 = por %p100, %p101
      %p103 = scmp.ne.s32.totalorder %s94, %s95
      %p104 = scmp.eq.s32.totalorder %s21, 0
      %p105 = por %p103, %p104
      %p106 = scmp.ne.s32.totalorder %s94, %s95
      %p107 = scmp.eq.s32.totalorder %s22, 1
      %p108 = por %p106, %p107
      %p110 = scmp.ne.s32.totalorder %s95, %s109
      %p111 = scmp.eq.s32.totalorder %s22, 0
      %p112 = por %p110, %p111
      %s114 = sadd.s32 %s113, 1
      %p117 = scmp.eq.s32.totalorder %s16, 1
      %p118 = scmp.ne.s32.totalorder %s113, %s115
      %p119 = scmp.eq.s32.totalorder %s16, 0
      %p120 = por %p118, %p119
      %p121 = scmp.ne.s32.totalorder %s113, %s115
      %p122 = scmp.eq.s32.totalorder %s21, 1
      %p123 = por %p121, %p122
      %p124 = scmp.ne.s32.totalorder %s115, %s116
      %p125 = scmp.eq.s32.totalorder %s21, 0
      %p126 = por %p124, %p125
      %p127 = scmp.ne.s32.totalorder %s115, %s116
      %p128 = scmp.eq.s32.totalorder %s22, 1
      %p129 = por %p127, %p128
      %p131 = scmp.ne.s32.totalorder %s116, %s130
      %p132 = scmp.eq.s32.totalorder %s22, 0
      %p133 = por %p131, %p132
      %s135 = sadd.s32 %s134, 1
      %p138 = scmp.eq.s32.totalorder %s16, 1
      %p139 = scmp.ne.s32.totalorder %s134, %s136
      %p140 = scmp.eq.s32.totalorder %s16, 0
      %p141 = por %p139, %p140
      %p142 = scmp.ne.s32.totalorder %s134, %s136
      %p143 = scmp.eq.s32.totalorder %s21, 1
      %p144 = por %p142, %p143
      %p145 = scmp.ne.s32.totalorder %s136, %s137
      %p146 = scmp.eq.s32.totalorder %s21, 0
      %p147 = por %p145, %p146
      %p148 = scmp.ne.s32.totalorder %s136, %s137
      %p149 = scmp.eq.s32.totalorder %s22, 1
      %p150 = por %p148, %p149
      %p152 = scmp.ne.s32.totalorder %s137, %s151
      %p153 = scmp.eq.s32.totalorder %s22, 0
      %p154 = por %p152, %p153
      %s156 = sadd.s32 %s155, 1
      %p159 = scmp.eq.s32.totalorder %s16, 1
      %p160 = scmp.ne.s32.totalorder %s155, %s157
      %p161 = scmp.eq.s32.totalorder %s16, 0
      %p162 = por %p160, %p161
      %p163 = scmp.ne.s32.totalorder %s155, %s157
      %p164 = scmp.eq.s32.totalorder %s21, 1
      %p165 = por %p163, %p164
      %p166 = scmp.ne.s32.totalorder %s157, %s158
      %p167 = scmp.eq.s32.totalorder %s21, 0
      %p168 = por %p166, %p167
      %p169 = scmp.ne.s32.totalorder %s157, %s158
      %p170 = scmp.eq.s32.totalorder %s22, 1
      %p171 = por %p169, %p170
      %p173 = scmp.ne.s32.totalorder %s158, %s172
      %p174 = scmp.eq.s32.totalorder %s22, 0
      %p175 = por %p173, %p174
      %s176 = ssub.s32 %s16, %s23
      %p177 = scmp.eq.s32.totalorder %s176, 0
      %s179 = sadd.s32 %s178, 1
      %s180 = scalar_select %p177, %s178, %s179
      %p183 = pneg %p177
      %p184 = scmp.eq.s32.totalorder %s16, 1
      %p185 = por %p183, %p184
      %p186 = scmp.ne.s32.totalorder %s178, %s181
      %p187 = scmp.eq.s32.totalorder %s16, 0
      %p188 = por %p186, %p187
      %p189 = scmp.ne.s32.totalorder %s178, %s181
      %p190 = scmp.eq.s32.totalorder %s21, 1
      %p191 = por %p189, %p190
      %p192 = scmp.ne.s32.totalorder %s181, %s182
      %p193 = scmp.eq.s32.totalorder %s21, 0
      %p194 = por %p192, %p193
      %p195 = scmp.ne.s32.totalorder %s181, %s182
      %p196 = scmp.eq.s32.totalorder %s22, 1
      %p197 = por %p195, %p196
      %p199 = scmp.ne.s32.totalorder %s182, %s198
      %p200 = scmp.eq.s32.totalorder %s22, 0
      %p201 = por %p199, %p200
      %p202 = scmp.le.s32.totalorder 1, %s16
      %p203 = scmp.lt.s32.totalorder %s16, 3
      %p204 = pnand %p202, %p203
      %p205 = pneg %p204
      // Predicated region
      $region9: #{tpu_custom_call.1} parent=5 // pred_check
        _
      $region10: #{tpu_custom_call.1} parent=5 // pred_check_branch
        %207 = sbr.rel (%p204) target = $region12
      $region11: #{tpu_custom_call.1} parent=5 // pred_region
        %s208 = ssub.s32 %s16, 1
        // Predicated region
        $region13: #{tpu_custom_call.1} parent=11 // pred_check
          %p209 = pneg %p63
        $region14: #{tpu_custom_call.1} parent=11 // pred_check_branch
          %211 = sbr.rel (%p209) target = $region16
        $region15: #{tpu_custom_call.1} parent=11 // pred_region
          _
        $region16: #{tpu_custom_call.1} parent=11 // pred_fallthru
          _
        // Predicated region
        $region17: #{tpu_custom_call.1} parent=11 // pred_check
          %p212 = pneg %p84
        $region18: #{tpu_custom_call.1} parent=11 // pred_check_branch
          %214 = sbr.rel (%p212) target = $region20
        $region19: #{tpu_custom_call.1} parent=11 // pred_region
          _
        $region20: #{tpu_custom_call.1} parent=11 // pred_fallthru
          _
        // Predicated region
        $region21: #{tpu_custom_call.1} parent=11 // pred_check
          %p215 = pneg %p105
        $region22: #{tpu_custom_call.1} parent=11 // pred_check_branch
          %217 = sbr.rel (%p215) target = $region24
        $region23: #{tpu_custom_call.1} parent=11 // pred_region
          _
        $region24: #{tpu_custom_call.1} parent=11 // pred_fallthru
          _
        // Predicated region
        $region25: #{tpu_custom_call.1} parent=11 // pred_check
          %p218 = pneg %p126
        $region26: #{tpu_custom_call.1} parent=11 // pred_check_branch
          %220 = sbr.rel (%p218) target = $region28
        $region27: #{tpu_custom_call.1} parent=11 // pred_region
          _
        $region28: #{tpu_custom_call.1} parent=11 // pred_fallthru
          _
        // Predicated region
        $region29: #{tpu_custom_call.1} parent=11 // pred_check
          %p221 = pneg %p147
        $region30: #{tpu_custom_call.1} parent=11 // pred_check_branch
          %223 = sbr.rel (%p221) target = $region32
        $region31: #{tpu_custom_call.1} parent=11 // pred_region
          _
        $region32: #{tpu_custom_call.1} parent=11 // pred_fallthru
          _
        // Predicated region
        $region33: #{tpu_custom_call.1} parent=11 // pred_check
          %p224 = pneg %p168
        $region34: #{tpu_custom_call.1} parent=11 // pred_check_branch
          %226 = sbr.rel (%p224) target = $region36
        $region35: #{tpu_custom_call.1} parent=11 // pred_region
          _
        $region36: #{tpu_custom_call.1} parent=11 // pred_fallthru
          _
      $region12: #{tpu_custom_call.1} parent=5 // pred_fallthru
        _
      %p227 = scmp.lt.s32.totalorder %s16, 2
      // Predicated region
      $region37: #{tpu_custom_call.1} parent=5 // pred_check
        %p228 = pneg %p227
      $region38: #{tpu_custom_call.1} parent=5 // pred_check_branch
        %230 = sbr.rel (%p228) target = $region40
      $region39: #{tpu_custom_call.1} parent=5 // pred_region
        // Predicated region
        $region41: #{tpu_custom_call.1} parent=39 // pred_check
          %p231 = pneg %p36
        $region42: #{tpu_custom_call.1} parent=39 // pred_check_branch
          %233 = sbr.rel (%p231) target = $region44
        $region43: #{tpu_custom_call.1} parent=39 // pred_region
          %p234 = scmp.lt.s32.totalorder %s16, 1
          %s235 = scalar_select %p234, %s16, 1
          %s236 = smul.addr %s235, 2
          %s237 = smul.addr %s236, 8
          %s238 = scalar_lea.vmem %s0, %s237
        $region44: #{tpu_custom_call.1} parent=39 // pred_fallthru
          _
      $region40: #{tpu_custom_call.1} parent=5 // pred_fallthru
        _
      %p239 = scmp.le.s32.totalorder 1, %s16
      %p240 = scmp.lt.s32.totalorder %s16, 3
      %p241 = pnand %p239, %p240
      %p242 = pneg %p241
      // Predicated region
      $region45: #{tpu_custom_call.1} parent=5 // pred_check
        _
      $region46: #{tpu_custom_call.1} parent=5 // pred_check_branch
        %244 = sbr.rel (%p241) target = $region48
      $region47: #{tpu_custom_call.1} parent=5 // pred_region
        %s245 = ssub.s32 %s16, 1
        %p246 = scmp.lt.s32.totalorder %s21, 1
        %s247 = scalar_select %p246, %s21, 1
        %s248 = smul.addr %s247, 2
        %s249 = smul.addr %s248, 8
        %s250 = scalar_lea.vmem %s0, %s249
        %p251 = pneg %p42
        %p252 = pneg %p39
        %p253 = pneg %p63
        %p254 = pneg %p60
        %p255 = pneg %p84
        %p256 = pneg %p81
        %p257 = pneg %p105
        %p258 = pneg %p102
        %p259 = pneg %p126
        %p260 = pneg %p123
        %p261 = pneg %p147
        %p262 = pneg %p144
        %p263 = pneg %p168
        %p264 = pneg %p165
        %p265 = pneg %p194
        %p266 = pneg %p191
        %s267 = sand.u32 %s181, 1
        %s268 = scalar_lea.sflag [#allocation6], %s267
        %s269 = sand.u32 %s181, 1
        %s270 = smul.addr %s269, 8
        %s271 = scalar_lea.vmem [#allocation5], %s270
        %p272 = scmp.lt.s32.totalorder %s21, 1
        %s273 = scalar_select %p272, %s21, 1
        %s274 = smul.addr %s273, 2
        %s275 = smul.addr %s274, 8
        %s276 = scalar_lea.vmem %s0, %s275
        %vm277 = vcmask 31744
        %278 = vst.msk [vmem:[#allocation2] sm:$0xff] %vm277, 0.0
        %279 = vst.msk [vmem:[#allocation2 + $0x8] sm:$0xff] %vm277, 0.0
        %280 = vst.msk [vmem:[#allocation2 + $0x10] sm:$0xff] %vm277, 0.0
        %281 = vst.msk [vmem:[#allocation2 + $0x18] sm:$0xff] %vm277, 0.0
        %282 = vst.msk [vmem:[#allocation2 + $0x20] sm:$0xff] %vm277, 0.0
        %283 = vst.msk [vmem:[#allocation2 + $0x28] sm:$0xff] %vm277, 0.0
        %284 = vst.msk [vmem:[#allocation2 + $0x30] sm:$0xff] %vm277, 0.0
        %v285 = vld [vmem:[%s276] sm:$0xff]
        %v286 = vld [vmem:[%s276 + $0x8] sm:$0xff]
        %287 = vst.msk [vmem:[#allocation2 + $0x38] sm:$0xff] %vm277, %v285
        %288 = vst.msk [vmem:[#allocation2 + $0x40] sm:$0xff] %vm277, %v286
        %v289 = vld [vmem:[#allocation2 + $0x30] sm:$0xff]
        %v290 = vld [vmem:[#allocation2 + $0x38] sm:$0xff]
        %v291 = vld [vmem:[#allocation2 + $0x40] sm:$0xff]
        %vm292 = vcmask 31746
        %293 = vst.msk [vmem:[#allocation3 - $0x2] sm:$0xfc] %vm292, %v289
        %294 = vst.msk [vmem:[#allocation3 + $0x6] sm:$0xff] %vm277, %v290
        %vm295 = vcmask 25600
        %296 = vst.msk [vmem:[#allocation3 + $0xe] sm:$0x3] %vm295, %v291
        %300 = vrot.lane.b32.xlu0 %v289, 4
        %v301 = vpop.permute.xlu0 %300
        %302 = vrot.lane.b32.xlu0 %v290, 4
        %v303 = vpop.permute.xlu0 %302
        %304 = vrot.lane.b32.xlu0 %v291, 4
        %v305 = vpop.permute.xlu0 %304
        %vm309 = vcmask 64547
        %310 = vst.msk [vmem:[#allocation3 - $0x3] sm:$0xf8] %vm309, %v301
        %vm311 = vcmask 64544
        %312 = vst.msk [vmem:[#allocation3 + $0x5] sm:$0xff] %vm311, %v303
        %vm313 = vcmask 59424
        %314 = vst.msk [vmem:[#allocation3 + $0xd] sm:$0x7] %vm313, %v305
        %315 = vrot.lane.b32.xlu0 %v289, 8
        %v316 = vpop.permute.xlu0 %315
        %317 = vrot.lane.b32.xlu0 %v290, 8
        %v318 = vpop.permute.xlu0 %317
        %319 = vrot.lane.b32.xlu0 %v291, 8
        %v320 = vpop.permute.xlu0 %319
        %vm324 = vcmask 97348
        %325 = vst.msk [vmem:[#allocation3 - $0x4] sm:$0xf0] %vm324, %v316
        %vm326 = vcmask 97344
        %327 = vst.msk [vmem:[#allocation3 + $0x4] sm:$0xff] %vm326, %v318
        %vm328 = vcmask 93248
        %329 = vst.msk [vmem:[#allocation3 + $0xc] sm:$0xf] %vm328, %v320
        %330 = vrot.lane.b32.xlu0 %v289, 12
        %v331 = vpop.permute.xlu0 %330
        %332 = vrot.lane.b32.xlu0 %v290, 12
        %v333 = vpop.permute.xlu0 %332
        %334 = vrot.lane.b32.xlu0 %v291, 12
        %v335 = vpop.permute.xlu0 %334
        %vm339 = vcmask 130149
        %340 = vst.msk [vmem:[#allocation3 - $0x5] sm:$0xe0] %vm339, %v331
        %vm341 = vcmask 130144
        %342 = vst.msk [vmem:[#allocation3 + $0x3] sm:$0xff] %vm341, %v333
        %vm343 = vcmask 127072
        %344 = vst.msk [vmem:[#allocation3 + $0xb] sm:$0x1f] %vm343, %v335
        %345 = vrot.lane.b32.xlu0 %v289, 16
        %v346 = vpop.permute.xlu0 %345
        %347 = vrot.lane.b32.xlu0 %v290, 16
        %v348 = vpop.permute.xlu0 %347
        %349 = vrot.lane.b32.xlu0 %v291, 16
        %v350 = vpop.permute.xlu0 %349
        %vm354 = vcmask 162950
        %355 = vst.msk [vmem:[#allocation3 - $0x6] sm:$0xc0] %vm354, %v346
        %vm356 = vcmask 162944
        %357 = vst.msk [vmem:[#allocation3 + $0x2] sm:$0xff] %vm356, %v348
        %vm358 = vcmask 160896
        %359 = vst.msk [vmem:[#allocation3 + $0xa] sm:$0x3f] %vm358, %v350
        %360 = vrot.lane.b32.xlu0 %v289, 20
        %v361 = vpop.permute.xlu0 %360
        %362 = vrot.lane.b32.xlu0 %v290, 20
        %v363 = vpop.permute.xlu0 %362
        %364 = vrot.lane.b32.xlu0 %v291, 20
        %v365 = vpop.permute.xlu0 %364
        %vm369 = vcmask 195751
        %370 = vst.msk [vmem:[#allocation3 - $0x7] sm:$0x80] %vm369, %v361
        %vm371 = vcmask 195744
        %372 = vst.msk [vmem:[#allocation3 + $0x1] sm:$0xff] %vm371, %v363
        %vm373 = vcmask 194720
        %374 = vst.msk [vmem:[#allocation3 + $0x9] sm:$0x7f] %vm373, %v365
        %375 = vrot.lane.b32.xlu0 %v290, 24
        %v376 = vpop.permute.xlu0 %375
        %377 = vrot.lane.b32.xlu0 %v291, 24
        %v378 = vpop.permute.xlu0 %377
        %vm381 = vcmask 228544
        %382 = vst.msk [vmem:[#allocation3] sm:$0xff] %vm381, %v376
        %383 = vst.msk [vmem:[#allocation3 + $0x8] sm:$0xff] %vm381, %v378
        %v384 = vld [vmem:[#allocation3] sm:$0xff]
        %v385 = vld [vmem:[#allocation3 + $0x8] sm:$0xff]
        %v386 = vld [vmem:[%s1] sm:$0xff]
        %v387 = vld [vmem:[%s1 + $0x8] sm:$0xff]
        %v388 = vld [vmem:[%s1 + $0x10] sm:$0xff]
        %v389 = vld [vmem:[%s1 + $0x18] sm:$0xf]
        %v390 = vld [vmem:[%s2] sm:$0x1]
        %v392 = vlaneseq
        %v393 = vshrl.u32 %v392, 7
        %v394 = vsub.s32 0, %v393
        %v395 = vrot.slane %v390, %v394
        %vm397 = vcmask 228352
        %v399 = vsel %vm397, %v384, 0
        %v402 = vsel %vm397, %v385, 0
        %vm404 = vcmask 1043456
        %v406 = vsel %vm404, %v389, 0
        %408 = vmatprep.subr.mxu0 0.0
        %409 = vmatpush1.msra.mxu0 0.0
        %410 = vmatprep.subr.mxu0 0.0
        %411 = vmatpush1.msra.mxu0 0.0
        %412 = vmatprep.subr.mxu0 0.0
        %413 = vmatpush1.msra.mxu0 0.0
        %414 = vmatprep.subr.mxu0 0.0
        %415 = vmatpush1.msra.mxu0 0.0
        %416 = vmatprep.subr.mxu0 0.0
        %417 = vmatpush1.msra.mxu0 0.0
        %418 = vmatprep.subr.mxu0 0.0
        %419 = vmatpush1.msra.mxu0 0.0
        %420 = vmatprep.subr.mxu0 0.0
        %421 = vmatpush1.msra.mxu0 0.0
        %422 = vmatprep.subr.mxu0 0.0
        %423 = vmatpush1.msra.mxu0 0.0
        %424 = vmatprep.subr.mxu0 0.0
        %425 = vmatpush1.msra.mxu0 0.0
        %426 = vmatprep.subr.mxu0 0.0
        %427 = vmatpush1.msra.mxu0 0.0
        %428 = vmatprep.subr.mxu0 0.0
        %429 = vmatpush1.msra.mxu0 0.0
        %430 = vmatprep.subr.mxu0 0.0
        %431 = vmatpush1.msra.mxu0 0.0
        %432 = vmatprep.subr.mxu0 0.0
        %433 = vmatpush1.msra.mxu0 %v406
        %434 = vmatprep.subr.mxu0 0.0
        %435 = vmatpush1.msra.mxu0 %v388
        %436 = vmatprep.subr.mxu0 0.0
        %437 = vmatpush1.msra.mxu0 %v387
        %438 = vmatprep.subr.mxu0 0.0
        %439 = vmatpush1.msra.mxu0 %v386
        %440 = vmatprep.subr.mxu0 0.0
        %441 = vmatpush2.msra.mxu0 0.0
        %442 = vmatprep.subr.mxu0 0.0
        %443 = vmatpush2.msra.mxu0 0.0
        %444 = vmatprep.subr.mxu0 0.0
        %445 = vmatpush2.msra.mxu0 0.0
        %446 = vmatprep.subr.mxu0 0.0
        %447 = vmatpush2.msra.mxu0 0.0
        %448 = vmatprep.subr.mxu0 0.0
        %449 = vmatpush2.msra.mxu0 0.0
        %450 = vmatprep.subr.mxu0 0.0
        %451 = vmatpush2.msra.mxu0 0.0
        %452 = vmatprep.subr.mxu0 0.0
        %453 = vmatpush2.msra.mxu0 0.0
        %454 = vmatprep.subr.mxu0 0.0
        %455 = vmatpush2.msra.mxu0 0.0
        %456 = vmatprep.subr.mxu0 0.0
        %457 = vmatpush2.msra.mxu0 0.0
        %458 = vmatprep.subr.mxu0 0.0
        %459 = vmatpush2.msra.mxu0 0.0
        %460 = vmatprep.subr.mxu0 0.0
        %461 = vmatpush2.msra.mxu0 0.0
        %462 = vmatprep.subr.mxu0 0.0
        %463 = vmatpush2.msra.mxu0 0.0
        %464 = vmatprep.subr.mxu0 0.0
        %465 = vmatpush2.msra.mxu0 0.0
        %466 = vmatprep.subr.mxu0 0.0
        %467 = vmatpush2.msra.mxu0 0.0
        %468 = vmatprep.subr.mxu0 0.0
        %469 = vmatpush2.msra.mxu0 0.0
        %470 = vmatprep.subr.mxu0 0.0
        %471 = vmatpush2.msra.mxu0 0.0
        %472 = vmatprep.mubr.f32.mxu0 0.0
        %473 = vmatmul.mubr.f32.gmra.mxu0 %v399
        %v474 = vpop.f32.mrf.mxu0
        %v475 = vadd.f32 %v395, %v474
        %v476 = vpop.f32.mrf.mxu0
        %477 = vmatprep.mubr.f32.mxu0 0.0
        %478 = vmatmul.mubr.f32.gmra.mxu0 %v402
        %v479 = vpop.f32.mrf.mxu0
        %v480 = vadd.f32 %v395, %v479
        %v481 = vpop.f32.mrf.mxu0
        %482 = vdwg.mxu0
        %vm483 = vcmp.gt.f32.partialorder %v475, 0.0
        %vm484 = vcmp.gt.f32.partialorder %v480, 0.0
        %v485 = vmin.f32 %v475, 0.0
        %v486 = vmin.f32 %v480, 0.0
        %v487 = vmul.f32 %v485, 1.442695
        %v488 = vpow.pop %v487
        %v489 = vmul.f32 %v486, 1.442695
        %v490 = vpow.pop %v489
        %v491 = vsub.f32 %v488, 1.0
        %v492 = vsub.f32 %v490, 1.0
        %v493 = vsel %vm483, %v475, %v491
        %v494 = vsel %vm484, %v480, %v492
        %v495 = vld [vmem:[%s3] sm:$0xf]
        %v496 = vld [vmem:[%s4] sm:$0x1]
        %v498 = vlaneseq
        %v499 = vshrl.u32 %v498, 7
        %v500 = vsub.s32 0, %v499
        %v501 = vrot.slane %v496, %v500
        %v504 = vsel %vm277, %v493, 0
        %v507 = vsel %vm277, %v494, 0
        %v510 = vsel %vm404, %v495, 0
        %512 = vmatprep.subr.mxu0 0.0
        %513 = vmatpush1.msra.mxu0 0.0
        %514 = vmatprep.subr.mxu0 0.0
        %515 = vmatpush1.msra.mxu0 0.0
        %516 = vmatprep.subr.mxu0 0.0
        %517 = vmatpush1.msra.mxu0 0.0
        %518 = vmatprep.subr.mxu0 0.0
        %519 = vmatpush1.msra.mxu0 0.0
        %520 = vmatprep.subr.mxu0 0.0
        %521 = vmatpush1.msra.mxu0 0.0
        %522 = vmatprep.subr.mxu0 0.0
        %523 = vmatpush1.msra.mxu0 0.0
        %524 = vmatprep.subr.mxu0 0.0
        %525 = vmatpush1.msra.mxu0 0.0
        %526 = vmatprep.subr.mxu0 0.0
        %527 = vmatpush1.msra.mxu0 0.0
        %528 = vmatprep.subr.mxu0 0.0
        %529 = vmatpush1.msra.mxu0 0.0
        %530 = vmatprep.subr.mxu0 0.0
        %531 = vmatpush1.msra.mxu0 0.0
        %532 = vmatprep.subr.mxu0 0.0
        %533 = vmatpush1.msra.mxu0 0.0
        %534 = vmatprep.subr.mxu0 0.0
        %535 = vmatpush1.msra.mxu0 0.0
        %536 = vmatprep.subr.mxu0 0.0
        %537 = vmatpush1.msra.mxu0 0.0
        %538 = vmatprep.subr.mxu0 0.0
        %539 = vmatpush1.msra.mxu0 0.0
        %540 = vmatprep.subr.mxu0 0.0
        %541 = vmatpush1.msra.mxu0 0.0
        %542 = vmatprep.subr.mxu0 0.0
        %543 = vmatpush1.msra.mxu0 %v510
        %544 = vmatprep.subr.mxu0 0.0
        %545 = vmatpush2.msra.mxu0 0.0
        %546 = vmatprep.subr.mxu0 0.0
        %547 = vmatpush2.msra.mxu0 0.0
        %548 = vmatprep.subr.mxu0 0.0
        %549 = vmatpush2.msra.mxu0 0.0
        %550 = vmatprep.subr.mxu0 0.0
        %551 = vmatpush2.msra.mxu0 0.0
        %552 = vmatprep.subr.mxu0 0.0
        %553 = vmatpush2.msra.mxu0 0.0
        %554 = vmatprep.subr.mxu0 0.0
        %555 = vmatpush2.msra.mxu0 0.0
        %556 = vmatprep.subr.mxu0 0.0
        %557 = vmatpush2.msra.mxu0 0.0
        %558 = vmatprep.subr.mxu0 0.0
        %559 = vmatpush2.msra.mxu0 0.0
        %560 = vmatprep.subr.mxu0 0.0
        %561 = vmatpush2.msra.mxu0 0.0
        %562 = vmatprep.subr.mxu0 0.0
        %563 = vmatpush2.msra.mxu0 0.0
        %564 = vmatprep.subr.mxu0 0.0
        %565 = vmatpush2.msra.mxu0 0.0
        %566 = vmatprep.subr.mxu0 0.0
        %567 = vmatpush2.msra.mxu0 0.0
        %568 = vmatprep.subr.mxu0 0.0
        %569 = vmatpush2.msra.mxu0 0.0
        %570 = vmatprep.subr.mxu0 0.0
        %571 = vmatpush2.msra.mxu0 0.0
        %572 = vmatprep.subr.mxu0 0.0
        %573 = vmatpush2.msra.mxu0 0.0
        %574 = vmatprep.subr.mxu0 0.0
        %575 = vmatpush2.msra.mxu0 0.0
        %576 = vmatprep.mubr.f32.mxu0 0.0
        %577 = vmatmul.mubr.f32.gmra.mxu0 %v504
        %v578 = vpop.f32.mrf.mxu0
        %v579 = vadd.f32 %v501, %v578
        %v580 = vpop.f32.mrf.mxu0
        %581 = vmatprep.mubr.f32.mxu0 0.0
        %582 = vmatmul.mubr.f32.gmra.mxu0 %v507
        %v583 = vpop.f32.mrf.mxu0
        %v584 = vadd.f32 %v501, %v583
        %v585 = vpop.f32.mrf.mxu0
        %586 = vdwg.mxu0
        %v587 = vadd.f32 %v290, %v579
        %v588 = vadd.f32 %v291, %v584
        %vm589 = vcmp.gt.f32.partialorder %v587, 0.0
        %vm590 = vcmp.gt.f32.partialorder %v588, 0.0
        %v591 = vmin.f32 %v587, 0.0
        %v592 = vmin.f32 %v588, 0.0
        %v593 = vmul.f32 %v591, 1.442695
        %v594 = vpow.pop %v593
        %v595 = vmul.f32 %v592, 1.442695
        %v596 = vpow.pop %v595
        %v597 = vsub.f32 %v594, 1.0
        %v598 = vsub.f32 %v596, 1.0
        %v599 = vsel %vm589, %v587, %v597
        %v600 = vsel %vm590, %v588, %v598
        %601 = vst.msk [vmem:[#allocation2 + $0x38] sm:$0xff] %vm277, %v599
        %602 = vst.msk [vmem:[#allocation2 + $0x40] sm:$0xff] %vm277, %v600
        %v603 = vld [vmem:[#allocation2 + $0x20] sm:$0xff]
        %v604 = vld [vmem:[#allocation2 + $0x28] sm:$0xff]
        %v605 = vld [vmem:[#allocation2 + $0x30] sm:$0xff]
        %v606 = vld [vmem:[#allocation2 + $0x38] sm:$0xff]
        %v607 = vld [vmem:[#allocation2 + $0x40] sm:$0xff]
        %vm608 = vcmask 31750
        %609 = vst.msk [vmem:[#allocation3 - $0x6] sm:$0xc0] %vm608, %v603
        %610 = vst.msk [vmem:[#allocation3 + $0x2] sm:$0xff] %vm277, %v604
        %vm611 = vcmask 29696
        %612 = vst.msk [vmem:[#allocation3 + $0xa] sm:$0x3f] %vm611, %v605
        %616 = vrot.lane.b32.xlu0 %v604, 4
        %v617 = vpop.permute.xlu0 %616
        %618 = vrot.lane.b32.xlu0 %v605, 4
        %v619 = vpop.permute.xlu0 %618
        %620 = vrot.lane.b32.xlu0 %v606, 4
        %v621 = vpop.permute.xlu0 %620
        %vm625 = vcmask 64545
        %626 = vst.msk [vmem:[#allocation3 - $0x1] sm:$0xfe] %vm625, %v617
        %627 = vst.msk [vmem:[#allocation3 + $0x7] sm:$0xff] %vm311, %v619
        %vm628 = vcmask 57376
        %629 = vst.msk [vmem:[#allocation3 + $0xf] sm:$0x1] %vm628, %v621
        %630 = vrot.lane.b32.xlu0 %v604, 8
        %v631 = vpop.permute.xlu0 %630
        %632 = vrot.lane.b32.xlu0 %v605, 8
        %v633 = vpop.permute.xlu0 %632
        %634 = vrot.lane.b32.xlu0 %v606, 8
        %v635 = vpop.permute.xlu0 %634
        %639 = vst.msk [vmem:[#allocation3 - $0x4] sm:$0xf0] %vm324, %v631
        %640 = vst.msk [vmem:[#allocation3 + $0x4] sm:$0xff] %vm326, %v633
        %641 = vst.msk [vmem:[#allocation3 + $0xc] sm:$0xf] %vm328, %v635
        %642 = vrot.lane.b32.xlu0 %v604, 12
        %v643 = vpop.permute.xlu0 %642
        %644 = vrot.lane.b32.xlu0 %v605, 12
        %v645 = vpop.permute.xlu0 %644
        %646 = vrot.lane.b32.xlu0 %v606, 12
        %v647 = vpop.permute.xlu0 %646
        %vm651 = vcmask 130151
        %652 = vst.msk [vmem:[#allocation3 - $0x7] sm:$0x80] %vm651, %v643
        %653 = vst.msk [vmem:[#allocation3 + $0x1] sm:$0xff] %vm341, %v645
        %vm654 = vcmask 129120
        %655 = vst.msk [vmem:[#allocation3 + $0x9] sm:$0x7f] %vm654, %v647
        %657 = vrot.lane.b32.xlu0 %v605, 16
        %v658 = vpop.permute.xlu0 %657
        %659 = vrot.lane.b32.xlu0 %v606, 16
        %v660 = vpop.permute.xlu0 %659
        %661 = vrot.lane.b32.xlu0 %v607, 16
        %v662 = vpop.permute.xlu0 %661
        %vm666 = vcmask 162946
        %667 = vst.msk [vmem:[#allocation3 - $0x2] sm:$0xfc] %vm666, %v658
        %668 = vst.msk [vmem:[#allocation3 + $0x6] sm:$0xff] %vm356, %v660
        %vm669 = vcmask 156800
        %670 = vst.msk [vmem:[#allocation3 + $0xe] sm:$0x3] %vm669, %v662
        %671 = vrot.lane.b32.xlu0 %v605, 20
        %v672 = vpop.permute.xlu0 %671
        %673 = vrot.lane.b32.xlu0 %v606, 20
        %v674 = vpop.permute.xlu0 %673
        %675 = vrot.lane.b32.xlu0 %v607, 20
        %v676 = vpop.permute.xlu0 %675
        %vm680 = vcmask 195749
        %681 = vst.msk [vmem:[#allocation3 - $0x5] sm:$0xe0] %vm680, %v672
        %682 = vst.msk [vmem:[#allocation3 + $0x3] sm:$0xff] %vm371, %v674
        %vm683 = vcmask 192672
        %684 = vst.msk [vmem:[#allocation3 + $0xb] sm:$0x1f] %vm683, %v676
        %685 = vrot.lane.b32.xlu0 %v606, 24
        %v686 = vpop.permute.xlu0 %685
        %687 = vrot.lane.b32.xlu0 %v607, 24
        %v688 = vpop.permute.xlu0 %687
        %691 = vst.msk [vmem:[#allocation3] sm:$0xff] %vm381, %v686
        %692 = vst.msk [vmem:[#allocation3 + $0x8] sm:$0xff] %vm381, %v688
        %v693 = vld [vmem:[#allocation3] sm:$0xff]
        %v694 = vld [vmem:[#allocation3 + $0x8] sm:$0xff]
        %s695 = scalar_lea.vmem %s1, 32
        %v696 = vld [vmem:[%s695] sm:$0xff]
        %v697 = vld [vmem:[%s695 + $0x8] sm:$0xff]
        %v698 = vld [vmem:[%s695 + $0x10] sm:$0xff]
        %v699 = vld [vmem:[%s695 + $0x18] sm:$0xf]
        %s700 = scalar_lea.vmem %s2, 1
        %v701 = vld [vmem:[%s700] sm:$0x1]
        %v703 = vlaneseq
        %v704 = vshrl.u32 %v703, 7
        %v705 = vsub.s32 0, %v704
        %v706 = vrot.slane %v701, %v705
        %v709 = vsel %vm397, %v693, 0
        %v712 = vsel %vm397, %v694, 0
        %v715 = vsel %vm404, %v699, 0
        %717 = vmatprep.subr.mxu0 0.0
        %718 = vmatpush1.msra.mxu0 0.0
        %719 = vmatprep.subr.mxu0 0.0
        %720 = vmatpush1.msra.mxu0 0.0
        %721 = vmatprep.subr.mxu0 0.0
        %722 = vmatpush1.msra.mxu0 0.0
        %723 = vmatprep.subr.mxu0 0.0
        %724 = vmatpush1.msra.mxu0 0.0
        %725 = vmatprep.subr.mxu0 0.0
        %726 = vmatpush1.msra.mxu0 0.0
        %727 = vmatprep.subr.mxu0 0.0
        %728 = vmatpush1.msra.mxu0 0.0
        %729 = vmatprep.subr.mxu0 0.0
        %730 = vmatpush1.msra.mxu0 0.0
        %731 = vmatprep.subr.mxu0 0.0
        %732 = vmatpush1.msra.mxu0 0.0
        %733 = vmatprep.subr.mxu0 0.0
        %734 = vmatpush1.msra.mxu0 0.0
        %735 = vmatprep.subr.mxu0 0.0
        %736 = vmatpush1.msra.mxu0 0.0
        %737 = vmatprep.subr.mxu0 0.0
        %738 = vmatpush1.msra.mxu0 0.0
        %739 = vmatprep.subr.mxu0 0.0
        %740 = vmatpush1.msra.mxu0 0.0
        %741 = vmatprep.subr.mxu0 0.0
        %742 = vmatpush1.msra.mxu0 %v715
        %743 = vmatprep.subr.mxu0 0.0
        %744 = vmatpush1.msra.mxu0 %v698
        %745 = vmatprep.subr.mxu0 0.0
        %746 = vmatpush1.msra.mxu0 %v697
        %747 = vmatprep.subr.mxu0 0.0
        %748 = vmatpush1.msra.mxu0 %v696
        %749 = vmatprep.subr.mxu0 0.0
        %750 = vmatpush2.msra.mxu0 0.0
        %751 = vmatprep.subr.mxu0 0.0
        %752 = vmatpush2.msra.mxu0 0.0
        %753 = vmatprep.subr.mxu0 0.0
        %754 = vmatpush2.msra.mxu0 0.0
        %755 = vmatprep.subr.mxu0 0.0
        %756 = vmatpush2.msra.mxu0 0.0
        %757 = vmatprep.subr.mxu0 0.0
        %758 = vmatpush2.msra.mxu0 0.0
        %759 = vmatprep.subr.mxu0 0.0
        %760 = vmatpush2.msra.mxu0 0.0
        %761 = vmatprep.subr.mxu0 0.0
        %762 = vmatpush2.msra.mxu0 0.0
        %763 = vmatprep.subr.mxu0 0.0
        %764 = vmatpush2.msra.mxu0 0.0
        %765 = vmatprep.subr.mxu0 0.0
        %766 = vmatpush2.msra.mxu0 0.0
        %767 = vmatprep.subr.mxu0 0.0
        %768 = vmatpush2.msra.mxu0 0.0
        %769 = vmatprep.subr.mxu0 0.0
        %770 = vmatpush2.msra.mxu0 0.0
        %771 = vmatprep.subr.mxu0 0.0
        %772 = vmatpush2.msra.mxu0 0.0
        %773 = vmatprep.subr.mxu0 0.0
        %774 = vmatpush2.msra.mxu0 0.0
        %775 = vmatprep.subr.mxu0 0.0
        %776 = vmatpush2.msra.mxu0 0.0
        %777 = vmatprep.subr.mxu0 0.0
        %778 = vmatpush2.msra.mxu0 0.0
        %779 = vmatprep.subr.mxu0 0.0
        %780 = vmatpush2.msra.mxu0 0.0
        %781 = vmatprep.mubr.f32.mxu0 0.0
        %782 = vmatmul.mubr.f32.gmra.mxu0 %v709
        %v783 = vpop.f32.mrf.mxu0
        %v784 = vadd.f32 %v706, %v783
        %v785 = vpop.f32.mrf.mxu0
        %786 = vmatprep.mubr.f32.mxu0 0.0
        %787 = vmatmul.mubr.f32.gmra.mxu0 %v712
        %v788 = vpop.f32.mrf.mxu0
        %v789 = vadd.f32 %v706, %v788
        %v790 = vpop.f32.mrf.mxu0
        %791 = vdwg.mxu0
        %vm792 = vcmp.gt.f32.partialorder %v784, 0.0
        %vm793 = vcmp.gt.f32.partialorder %v789, 0.0
        %v794 = vmin.f32 %v784, 0.0
        %v795 = vmin.f32 %v789, 0.0
        %v796 = vmul.f32 %v794, 1.442695
        %v797 = vpow.pop %v796
        %v798 = vmul.f32 %v795, 1.442695
        %v799 = vpow.pop %v798
        %v800 = vsub.f32 %v797, 1.0
        %v801 = vsub.f32 %v799, 1.0
        %v802 = vsel %vm792, %v784, %v800
        %v803 = vsel %vm793, %v789, %v801
        %s804 = scalar_lea.vmem %s3, 4
        %v805 = vld [vmem:[%s804] sm:$0xf]
        %s806 = scalar_lea.vmem %s4, 1
        %v807 = vld [vmem:[%s806] sm:$0x1]
        %v809 = vlaneseq
        %v810 = vshrl.u32 %v809, 7
        %v811 = vsub.s32 0, %v810
        %v812 = vrot.slane %v807, %v811
        %v815 = vsel %vm277, %v802, 0
        %v818 = vsel %vm277, %v803, 0
        %v821 = vsel %vm404, %v805, 0
        %823 = vmatprep.subr.mxu0 0.0
        %824 = vmatpush1.msra.mxu0 0.0
        %825 = vmatprep.subr.mxu0 0.0
        %826 = vmatpush1.msra.mxu0 0.0
        %827 = vmatprep.subr.mxu0 0.0
        %828 = vmatpush1.msra.mxu0 0.0
        %829 = vmatprep.subr.mxu0 0.0
        %830 = vmatpush1.msra.mxu0 0.0
        %831 = vmatprep.subr.mxu0 0.0
        %832 = vmatpush1.msra.mxu0 0.0
        %833 = vmatprep.subr.mxu0 0.0
        %834 = vmatpush1.msra.mxu0 0.0
        %835 = vmatprep.subr.mxu0 0.0
        %836 = vmatpush1.msra.mxu0 0.0
        %837 = vmatprep.subr.mxu0 0.0
        %838 = vmatpush1.msra.mxu0 0.0
        %839 = vmatprep.subr.mxu0 0.0
        %840 = vmatpush1.msra.mxu0 0.0
        %841 = vmatprep.subr.mxu0 0.0
        %842 = vmatpush1.msra.mxu0 0.0
        %843 = vmatprep.subr.mxu0 0.0
        %844 = vmatpush1.msra.mxu0 0.0
        %845 = vmatprep.subr.mxu0 0.0
        %846 = vmatpush1.msra.mxu0 0.0
        %847 = vmatprep.subr.mxu0 0.0
        %848 = vmatpush1.msra.mxu0 0.0
        %849 = vmatprep.subr.mxu0 0.0
        %850 = vmatpush1.msra.mxu0 0.0
        %851 = vmatprep.subr.mxu0 0.0
        %852 = vmatpush1.msra.mxu0 0.0
        %853 = vmatprep.subr.mxu0 0.0
        %854 = vmatpush1.msra.mxu0 %v821
        %855 = vmatprep.subr.mxu0 0.0
        %856 = vmatpush2.msra.mxu0 0.0
        %857 = vmatprep.subr.mxu0 0.0
        %858 = vmatpush2.msra.mxu0 0.0
        %859 = vmatprep.subr.mxu0 0.0
        %860 = vmatpush2.msra.mxu0 0.0
        %861 = vmatprep.subr.mxu0 0.0
        %862 = vmatpush2.msra.mxu0 0.0
        %863 = vmatprep.subr.mxu0 0.0
        %864 = vmatpush2.msra.mxu0 0.0
        %865 = vmatprep.subr.mxu0 0.0
        %866 = vmatpush2.msra.mxu0 0.0
        %867 = vmatprep.subr.mxu0 0.0
        %868 = vmatpush2.msra.mxu0 0.0
        %869 = vmatprep.subr.mxu0 0.0
        %870 = vmatpush2.msra.mxu0 0.0
        %871 = vmatprep.subr.mxu0 0.0
        %872 = vmatpush2.msra.mxu0 0.0
        %873 = vmatprep.subr.mxu0 0.0
        %874 = vmatpush2.msra.mxu0 0.0
        %875 = vmatprep.subr.mxu0 0.0
        %876 = vmatpush2.msra.mxu0 0.0
        %877 = vmatprep.subr.mxu0 0.0
        %878 = vmatpush2.msra.mxu0 0.0
        %879 = vmatprep.subr.mxu0 0.0
        %880 = vmatpush2.msra.mxu0 0.0
        %881 = vmatprep.subr.mxu0 0.0
        %882 = vmatpush2.msra.mxu0 0.0
        %883 = vmatprep.subr.mxu0 0.0
        %884 = vmatpush2.msra.mxu0 0.0
        %885 = vmatprep.subr.mxu0 0.0
        %886 = vmatpush2.msra.mxu0 0.0
        %887 = vmatprep.mubr.f32.mxu0 0.0
        %888 = vmatmul.mubr.f32.gmra.mxu0 %v815
        %v889 = vpop.f32.mrf.mxu0
        %v890 = vadd.f32 %v812, %v889
        %v891 = vpop.f32.mrf.mxu0
        %892 = vmatprep.mubr.f32.mxu0 0.0
        %893 = vmatmul.mubr.f32.gmra.mxu0 %v818
        %v894 = vpop.f32.mrf.mxu0
        %v895 = vadd.f32 %v812, %v894
        %v896 = vpop.f32.mrf.mxu0
        %897 = vdwg.mxu0
        %v898 = vadd.f32 %v606, %v890
        %v899 = vadd.f32 %v607, %v895
        %vm900 = vcmp.gt.f32.partialorder %v898, 0.0
        %vm901 = vcmp.gt.f32.partialorder %v899, 0.0
        %v902 = vmin.f32 %v898, 0.0
        %v903 = vmin.f32 %v899, 0.0
        %v904 = vmul.f32 %v902, 1.442695
        %v905 = vpow.pop %v904
        %v906 = vmul.f32 %v903, 1.442695
        %v907 = vpow.pop %v906
        %v908 = vsub.f32 %v905, 1.0
        %v909 = vsub.f32 %v907, 1.0
        %v910 = vsel %vm900, %v898, %v908
        %v911 = vsel %vm901, %v899, %v909
        %912 = vst.msk [vmem:[#allocation2 + $0x38] sm:$0xff] %vm277, %v910
        %913 = vst.msk [vmem:[#allocation2 + $0x40] sm:$0xff] %vm277, %v911
        %v914 = vld [vmem:[#allocation2] sm:$0xff]
        %v915 = vld [vmem:[#allocation2 + $0x8] sm:$0xff]
        %v916 = vld [vmem:[#allocation2 + $0x10] sm:$0xff]
        %v917 = vld [vmem:[#allocation2 + $0x18] sm:$0xff]
        %v918 = vld [vmem:[#allocation2 + $0x20] sm:$0xff]
        %v919 = vld [vmem:[#allocation2 + $0x28] sm:$0xff]
        %v920 = vld [vmem:[#allocation2 + $0x30] sm:$0xff]
        %v921 = vld [vmem:[#allocation2 + $0x38] sm:$0xff]
        %v922 = vld [vmem:[#allocation2 + $0x40] sm:$0xff]
        %923 = vst.msk [vmem:[#allocation3 - $0x2] sm:$0xfc] %vm292, %v914
        %924 = vst.msk [vmem:[#allocation3 + $0x6] sm:$0xff] %vm277, %v915
        %925 = vst.msk [vmem:[#allocation3 + $0xe] sm:$0x3] %vm295, %v916
        %929 = vrot.lane.b32.xlu0 %v915, 4
        %v930 = vpop.permute.xlu0 %929
        %931 = vrot.lane.b32.xlu0 %v916, 4
        %v932 = vpop.permute.xlu0 %931
        %933 = vrot.lane.b32.xlu0 %v917, 4
        %v934 = vpop.permute.xlu0 %933
        %938 = vst.msk [vmem:[#allocation3 - $0x3] sm:$0xf8] %vm309, %v930
        %939 = vst.msk [vmem:[#allocation3 + $0x5] sm:$0xff] %vm311, %v932
        %940 = vst.msk [vmem:[#allocation3 + $0xd] sm:$0x7] %vm313, %v934
        %942 = vrot.lane.b32.xlu0 %v916, 8
        %v943 = vpop.permute.xlu0 %942
        %944 = vrot.lane.b32.xlu0 %v917, 8
        %v945 = vpop.permute.xlu0 %944
        %946 = vrot.lane.b32.xlu0 %v918, 8
        %v947 = vpop.permute.xlu0 %946
        %951 = vst.msk [vmem:[#allocation3 - $0x4] sm:$0xf0] %vm324, %v943
        %952 = vst.msk [vmem:[#allocation3 + $0x4] sm:$0xff] %vm326, %v945
        %953 = vst.msk [vmem:[#allocation3 + $0xc] sm:$0xf] %vm328, %v947
        %955 = vrot.lane.b32.xlu0 %v917, 12
        %v956 = vpop.permute.xlu0 %955
        %957 = vrot.lane.b32.xlu0 %v918, 12
        %v958 = vpop.permute.xlu0 %957
        %959 = vrot.lane.b32.xlu0 %v919, 12
        %v960 = vpop.permute.xlu0 %959
        %964 = vst.msk [vmem:[#allocation3 - $0x5] sm:$0xe0] %vm339, %v956
        %965 = vst.msk [vmem:[#allocation3 + $0x3] sm:$0xff] %vm341, %v958
        %966 = vst.msk [vmem:[#allocation3 + $0xb] sm:$0x1f] %vm343, %v960
        %968 = vrot.lane.b32.xlu0 %v918, 16
        %v969 = vpop.permute.xlu0 %968
        %970 = vrot.lane.b32.xlu0 %v919, 16
        %v971 = vpop.permute.xlu0 %970
        %972 = vrot.lane.b32.xlu0 %v920, 16
        %v973 = vpop.permute.xlu0 %972
        %977 = vst.msk [vmem:[#allocation3 - $0x6] sm:$0xc0] %vm354, %v969
        %978 = vst.msk [vmem:[#allocation3 + $0x2] sm:$0xff] %vm356, %v971
        %979 = vst.msk [vmem:[#allocation3 + $0xa] sm:$0x3f] %vm358, %v973
        %981 = vrot.lane.b32.xlu0 %v919, 20
        %v982 = vpop.permute.xlu0 %981
        %983 = vrot.lane.b32.xlu0 %v920, 20
        %v984 = vpop.permute.xlu0 %983
        %985 = vrot.lane.b32.xlu0 %v921, 20
        %v986 = vpop.permute.xlu0 %985
        %990 = vst.msk [vmem:[#allocation3 - $0x7] sm:$0x80] %vm369, %v982
        %991 = vst.msk [vmem:[#allocation3 + $0x1] sm:$0xff] %vm371, %v984
        %992 = vst.msk [vmem:[#allocation3 + $0x9] sm:$0x7f] %vm373, %v986
        %994 = vrot.lane.b32.xlu0 %v921, 24
        %v995 = vpop.permute.xlu0 %994
        %996 = vrot.lane.b32.xlu0 %v922, 24
        %v997 = vpop.permute.xlu0 %996
        %1000 = vst.msk [vmem:[#allocation3] sm:$0xff] %vm381, %v995
        %1001 = vst.msk [vmem:[#allocation3 + $0x8] sm:$0xff] %vm381, %v997
        %v1002 = vld [vmem:[#allocation3] sm:$0xff]
        %v1003 = vld [vmem:[#allocation3 + $0x8] sm:$0xff]
        %s1004 = scalar_lea.vmem %s1, 64
        %v1005 = vld [vmem:[%s1004] sm:$0xff]
        %v1006 = vld [vmem:[%s1004 + $0x8] sm:$0xff]
        %v1007 = vld [vmem:[%s1004 + $0x10] sm:$0xff]
        %v1008 = vld [vmem:[%s1004 + $0x18] sm:$0xf]
        %s1009 = scalar_lea.vmem %s2, 2
        %v1010 = vld [vmem:[%s1009] sm:$0x1]
        %v1012 = vlaneseq
        %v1013 = vshrl.u32 %v1012, 7
        %v1014 = vsub.s32 0, %v1013
        %v1015 = vrot.slane %v1010, %v1014
        %v1018 = vsel %vm397, %v1002, 0
        %v1021 = vsel %vm397, %v1003, 0
        %v1024 = vsel %vm404, %v1008, 0
        %1026 = vmatprep.subr.mxu0 0.0
        %1027 = vmatpush1.msra.mxu0 0.0
        %1028 = vmatprep.subr.mxu0 0.0
        %1029 = vmatpush1.msra.mxu0 0.0
        %1030 = vmatprep.subr.mxu0 0.0
        %1031 = vmatpush1.msra.mxu0 0.0
        %1032 = vmatprep.subr.mxu0 0.0
        %1033 = vmatpush1.msra.mxu0 0.0
        %1034 = vmatprep.subr.mxu0 0.0
        %1035 = vmatpush1.msra.mxu0 0.0
        %1036 = vmatprep.subr.mxu0 0.0
        %1037 = vmatpush1.msra.mxu0 0.0
        %1038 = vmatprep.subr.mxu0 0.0
        %1039 = vmatpush1.msra.mxu0 0.0
        %1040 = vmatprep.subr.mxu0 0.0
        %1041 = vmatpush1.msra.mxu0 0.0
        %1042 = vmatprep.subr.mxu0 0.0
        %1043 = vmatpush1.msra.mxu0 0.0
        %1044 = vmatprep.subr.mxu0 0.0
        %1045 = vmatpush1.msra.mxu0 0.0
        %1046 = vmatprep.subr.mxu0 0.0
        %1047 = vmatpush1.msra.mxu0 0.0
        %1048 = vmatprep.subr.mxu0 0.0
        %1049 = vmatpush1.msra.mxu0 0.0
        %1050 = vmatprep.subr.mxu0 0.0
        %1051 = vmatpush1.msra.mxu0 %v1024
        %1052 = vmatprep.subr.mxu0 0.0
        %1053 = vmatpush1.msra.mxu0 %v1007
        %1054 = vmatprep.subr.mxu0 0.0
        %1055 = vmatpush1.msra.mxu0 %v1006
        %1056 = vmatprep.subr.mxu0 0.0
        %1057 = vmatpush1.msra.mxu0 %v1005
        %1058 = vmatprep.subr.mxu0 0.0
        %1059 = vmatpush2.msra.mxu0 0.0
        %1060 = vmatprep.subr.mxu0 0.0
        %1061 = vmatpush2.msra.mxu0 0.0
        %1062 = vmatprep.subr.mxu0 0.0
        %1063 = vmatpush2.msra.mxu0 0.0
        %1064 = vmatprep.subr.mxu0 0.0
        %1065 = vmatpush2.msra.mxu0 0.0
        %1066 = vmatprep.subr.mxu0 0.0
        %1067 = vmatpush2.msra.mxu0 0.0
        %1068 = vmatprep.subr.mxu0 0.0
        %1069 = vmatpush2.msra.mxu0 0.0
        %1070 = vmatprep.subr.mxu0 0.0
        %1071 = vmatpush2.msra.mxu0 0.0
        %1072 = vmatprep.subr.mxu0 0.0
        %1073 = vmatpush2.msra.mxu0 0.0
        %1074 = vmatprep.subr.mxu0 0.0
        %1075 = vmatpush2.msra.mxu0 0.0
        %1076 = vmatprep.subr.mxu0 0.0
        %1077 = vmatpush2.msra.mxu0 0.0
        %1078 = vmatprep.subr.mxu0 0.0
        %1079 = vmatpush2.msra.mxu0 0.0
        %1080 = vmatprep.subr.mxu0 0.0
        %1081 = vmatpush2.msra.mxu0 0.0
        %1082 = vmatprep.subr.mxu0 0.0
        %1083 = vmatpush2.msra.mxu0 0.0
        %1084 = vmatprep.subr.mxu0 0.0
        %1085 = vmatpush2.msra.mxu0 0.0
        %1086 = vmatprep.subr.mxu0 0.0
        %1087 = vmatpush2.msra.mxu0 0.0
        %1088 = vmatprep.subr.mxu0 0.0
        %1089 = vmatpush2.msra.mxu0 0.0
        %1090 = vmatprep.mubr.f32.mxu0 0.0
        %1091 = vmatmul.mubr.f32.gmra.mxu0 %v1018
        %v1092 = vpop.f32.mrf.mxu0
        %v1093 = vadd.f32 %v1015, %v1092
        %v1094 = vpop.f32.mrf.mxu0
        %1095 = vmatprep.mubr.f32.mxu0 0.0
        %1096 = vmatmul.mubr.f32.gmra.mxu0 %v1021
        %v1097 = vpop.f32.mrf.mxu0
        %v1098 = vadd.f32 %v1015, %v1097
        %v1099 = vpop.f32.mrf.mxu0
        %1100 = vdwg.mxu0
        %vm1101 = vcmp.gt.f32.partialorder %v1093, 0.0
        %vm1102 = vcmp.gt.f32.partialorder %v1098, 0.0
        %v1103 = vmin.f32 %v1093, 0.0
        %v1104 = vmin.f32 %v1098, 0.0
        %v1105 = vmul.f32 %v1103, 1.442695
        %v1106 = vpow.pop %v1105
        %v1107 = vmul.f32 %v1104, 1.442695
        %v1108 = vpow.pop %v1107
        %v1109 = vsub.f32 %v1106, 1.0
        %v1110 = vsub.f32 %v1108, 1.0
        %v1111 = vsel %vm1101, %v1093, %v1109
        %v1112 = vsel %vm1102, %v1098, %v1110
        %s1113 = scalar_lea.vmem %s3, 8
        %v1114 = vld [vmem:[%s1113] sm:$0xf]
        %s1115 = scalar_lea.vmem %s4, 2
        %v1116 = vld [vmem:[%s1115] sm:$0x1]
        %v1118 = vlaneseq
        %v1119 = vshrl.u32 %v1118, 7
        %v1120 = vsub.s32 0, %v1119
        %v1121 = vrot.slane %v1116, %v1120
        %v1124 = vsel %vm277, %v1111, 0
        %v1127 = vsel %vm277, %v1112, 0
        %v1130 = vsel %vm404, %v1114, 0
        %1132 = vmatprep.subr.mxu0 0.0
        %1133 = vmatpush1.msra.mxu0 0.0
        %1134 = vmatprep.subr.mxu0 0.0
        %1135 = vmatpush1.msra.mxu0 0.0
        %1136 = vmatprep.subr.mxu0 0.0
        %1137 = vmatpush1.msra.mxu0 0.0
        %1138 = vmatprep.subr.mxu0 0.0
        %1139 = vmatpush1.msra.mxu0 0.0
        %1140 = vmatprep.subr.mxu0 0.0
        %1141 = vmatpush1.msra.mxu0 0.0
        %1142 = vmatprep.subr.mxu0 0.0
        %1143 = vmatpush1.msra.mxu0 0.0
        %1144 = vmatprep.subr.mxu0 0.0
        %1145 = vmatpush1.msra.mxu0 0.0
        %1146 = vmatprep.subr.mxu0 0.0
        %1147 = vmatpush1.msra.mxu0 0.0
        %1148 = vmatprep.subr.mxu0 0.0
        %1149 = vmatpush1.msra.mxu0 0.0
        %1150 = vmatprep.subr.mxu0 0.0
        %1151 = vmatpush1.msra.mxu0 0.0
        %1152 = vmatprep.subr.mxu0 0.0
        %1153 = vmatpush1.msra.mxu0 0.0
        %1154 = vmatprep.subr.mxu0 0.0
        %1155 = vmatpush1.msra.mxu0 0.0
        %1156 = vmatprep.subr.mxu0 0.0
        %1157 = vmatpush1.msra.mxu0 0.0
        %1158 = vmatprep.subr.mxu0 0.0
        %1159 = vmatpush1.msra.mxu0 0.0
        %1160 = vmatprep.subr.mxu0 0.0
        %1161 = vmatpush1.msra.mxu0 0.0
        %1162 = vmatprep.subr.mxu0 0.0
        %1163 = vmatpush1.msra.mxu0 %v1130
        %1164 = vmatprep.subr.mxu0 0.0
        %1165 = vmatpush2.msra.mxu0 0.0
        %1166 = vmatprep.subr.mxu0 0.0
        %1167 = vmatpush2.msra.mxu0 0.0
        %1168 = vmatprep.subr.mxu0 0.0
        %1169 = vmatpush2.msra.mxu0 0.0
        %1170 = vmatprep.subr.mxu0 0.0
        %1171 = vmatpush2.msra.mxu0 0.0
        %1172 = vmatprep.subr.mxu0 0.0
        %1173 = vmatpush2.msra.mxu0 0.0
        %1174 = vmatprep.subr.mxu0 0.0
        %1175 = vmatpush2.msra.mxu0 0.0
        %1176 = vmatprep.subr.mxu0 0.0
        %1177 = vmatpush2.msra.mxu0 0.0
        %1178 = vmatprep.subr.mxu0 0.0
        %1179 = vmatpush2.msra.mxu0 0.0
        %1180 = vmatprep.subr.mxu0 0.0
        %1181 = vmatpush2.msra.mxu0 0.0
        %1182 = vmatprep.subr.mxu0 0.0
        %1183 = vmatpush2.msra.mxu0 0.0
        %1184 = vmatprep.subr.mxu0 0.0
        %1185 = vmatpush2.msra.mxu0 0.0
        %1186 = vmatprep.subr.mxu0 0.0
        %1187 = vmatpush2.msra.mxu0 0.0
        %1188 = vmatprep.subr.mxu0 0.0
        %1189 = vmatpush2.msra.mxu0 0.0
        %1190 = vmatprep.subr.mxu0 0.0
        %1191 = vmatpush2.msra.mxu0 0.0
        %1192 = vmatprep.subr.mxu0 0.0
        %1193 = vmatpush2.msra.mxu0 0.0
        %1194 = vmatprep.subr.mxu0 0.0
        %1195 = vmatpush2.msra.mxu0 0.0
        %1196 = vmatprep.mubr.f32.mxu0 0.0
        %1197 = vmatmul.mubr.f32.gmra.mxu0 %v1124
        %v1198 = vpop.f32.mrf.mxu0
        %v1199 = vadd.f32 %v1121, %v1198
        %v1200 = vpop.f32.mrf.mxu0
        %1201 = vmatprep.mubr.f32.mxu0 0.0
        %1202 = vmatmul.mubr.f32.gmra.mxu0 %v1127
        %v1203 = vpop.f32.mrf.mxu0
        %v1204 = vadd.f32 %v1121, %v1203
        %v1205 = vpop.f32.mrf.mxu0
        %1206 = vdwg.mxu0
        %v1207 = vadd.f32 %v921, %v1199
        %v1208 = vadd.f32 %v922, %v1204
        %vm1209 = vcmp.gt.f32.partialorder %v1207, 0.0
        %vm1210 = vcmp.gt.f32.partialorder %v1208, 0.0
        %v1211 = vmin.f32 %v1207, 0.0
        %v1212 = vmin.f32 %v1208, 0.0
        %v1213 = vmul.f32 %v1211, 1.442695
        %v1214 = vpow.pop %v1213
        %v1215 = vmul.f32 %v1212, 1.442695
        %v1216 = vpow.pop %v1215
        %v1217 = vsub.f32 %v1214, 1.0
        %v1218 = vsub.f32 %v1216, 1.0
        %v1219 = vsel %vm1209, %v1207, %v1217
        %v1220 = vsel %vm1210, %v1208, %v1218
        %1221 = vst.msk [vmem:[#allocation2 + $0x38] sm:$0xff] %vm277, %v1219
        %1222 = vst.msk [vmem:[#allocation2 + $0x40] sm:$0xff] %vm277, %v1220
        %s1223 = scalar_lea.vmem [#allocation2], 53
        %v1224 = vld [vmem:[%s1223] ss:$2 sm:$0xff]
        %1225 = vst.msk [vmem:[#allocation4] sm:$0xff] %vm277, %v1224
        %s1226 = scalar_lea.vmem [#allocation2], 54
        %v1227 = vld [vmem:[%s1226] ss:$2 sm:$0xff]
        %1229 = vrot.lane.b32.xlu0 %v1227, 4
        %v1230 = vpop.permute.xlu0 %1229
        %1232 = vst.msk [vmem:[#allocation4] sm:$0xff] %vm311, %v1230
        %s1233 = scalar_lea.vmem [#allocation2], 55
        %v1234 = vld [vmem:[%s1233] ss:$2 sm:$0xff]
        %1236 = vrot.lane.b32.xlu0 %v1234, 8
        %v1237 = vpop.permute.xlu0 %1236
        %1239 = vst.msk [vmem:[#allocation4] sm:$0xff] %vm326, %v1237
        %s1240 = scalar_lea.vmem [#allocation2], 56
        %v1241 = vld [vmem:[%s1240] ss:$2 sm:$0xff]
        %1243 = vrot.lane.b32.xlu0 %v1241, 12
        %v1244 = vpop.permute.xlu0 %1243
        %1246 = vst.msk [vmem:[#allocation4] sm:$0xff] %vm341, %v1244
        %v1247 = vld [vmem:[#allocation4] sm:$0xff]
        %v1248 = vld [vmem:[%s5] sm:$0xff]
        %v1249 = vld [vmem:[%s5 + $0x8] sm:$0xff]
        %v1250 = vld [vmem:[%s6] sm:$0x1]
        %v1252 = vlaneseq
        %v1253 = vshrl.u32 %v1252, 7
        %v1254 = vsub.s32 0, %v1253
        %v1255 = vrot.slane %v1250, %v1254
        %vm1257 = vcmask 130048
        %v1259 = vsel %vm1257, %v1247, 0
        %1261 = vmatprep.subr.mxu0 0.0
        %1262 = vmatpush1.msra.mxu0 0.0
        %1263 = vmatprep.subr.mxu0 0.0
        %1264 = vmatpush1.msra.mxu0 0.0
        %1265 = vmatprep.subr.mxu0 0.0
        %1266 = vmatpush1.msra.mxu0 0.0
        %1267 = vmatprep.subr.mxu0 0.0
        %1268 = vmatpush1.msra.mxu0 0.0
        %1269 = vmatprep.subr.mxu0 0.0
        %1270 = vmatpush1.msra.mxu0 0.0
        %1271 = vmatprep.subr.mxu0 0.0
        %1272 = vmatpush1.msra.mxu0 0.0
        %1273 = vmatprep.subr.mxu0 0.0
        %1274 = vmatpush1.msra.mxu0 0.0
        %1275 = vmatprep.subr.mxu0 0.0
        %1276 = vmatpush1.msra.mxu0 0.0
        %1277 = vmatprep.subr.mxu0 0.0
        %1278 = vmatpush1.msra.mxu0 0.0
        %1279 = vmatprep.subr.mxu0 0.0
        %1280 = vmatpush1.msra.mxu0 0.0
        %1281 = vmatprep.subr.mxu0 0.0
        %1282 = vmatpush1.msra.mxu0 0.0
        %1283 = vmatprep.subr.mxu0 0.0
        %1284 = vmatpush1.msra.mxu0 0.0
        %1285 = vmatprep.subr.mxu0 0.0
        %1286 = vmatpush1.msra.mxu0 0.0
        %1287 = vmatprep.subr.mxu0 0.0
        %1288 = vmatpush1.msra.mxu0 0.0
        %1289 = vmatprep.subr.mxu0 0.0
        %1290 = vmatpush1.msra.mxu0 %v1249
        %1291 = vmatprep.subr.mxu0 0.0
        %1292 = vmatpush1.msra.mxu0 %v1248
        %1293 = vmatprep.subr.mxu0 0.0
        %1294 = vmatpush2.msra.mxu0 0.0
        %1295 = vmatprep.subr.mxu0 0.0
        %1296 = vmatpush2.msra.mxu0 0.0
        %1297 = vmatprep.subr.mxu0 0.0
        %1298 = vmatpush2.msra.mxu0 0.0
        %1299 = vmatprep.subr.mxu0 0.0
        %1300 = vmatpush2.msra.mxu0 0.0
        %1301 = vmatprep.subr.mxu0 0.0
        %1302 = vmatpush2.msra.mxu0 0.0
        %1303 = vmatprep.subr.mxu0 0.0
        %1304 = vmatpush2.msra.mxu0 0.0
        %1305 = vmatprep.subr.mxu0 0.0
        %1306 = vmatpush2.msra.mxu0 0.0
        %1307 = vmatprep.subr.mxu0 0.0
        %1308 = vmatpush2.msra.mxu0 0.0
        %1309 = vmatprep.subr.mxu0 0.0
        %1310 = vmatpush2.msra.mxu0 0.0
        %1311 = vmatprep.subr.mxu0 0.0
        %1312 = vmatpush2.msra.mxu0 0.0
        %1313 = vmatprep.subr.mxu0 0.0
        %1314 = vmatpush2.msra.mxu0 0.0
        %1315 = vmatprep.subr.mxu0 0.0
        %1316 = vmatpush2.msra.mxu0 0.0
        %1317 = vmatprep.subr.mxu0 0.0
        %1318 = vmatpush2.msra.mxu0 0.0
        %1319 = vmatprep.subr.mxu0 0.0
        %1320 = vmatpush2.msra.mxu0 0.0
        %1321 = vmatprep.subr.mxu0 0.0
        %1322 = vmatpush2.msra.mxu0 0.0
        %1323 = vmatprep.subr.mxu0 0.0
        %1324 = vmatpush2.msra.mxu0 0.0
        %1325 = vmatprep.mubr.f32.mxu0 0.0
        %1326 = vmatmul.mubr.f32.gmra.mxu0 %v1259
        %v1327 = vpop.f32.mrf.mxu0
        %v1328 = vadd.f32 %v1255, %v1327
        %v1329 = vpop.f32.mrf.mxu0
        %1330 = vdwg.mxu0
        %vm1331 = vcmask 64512
        %1332 = vst.msk [vmem:[%s271] sm:$0xff] %vm1331, %v1328
        %s1333 = sand.u32 %s181, 1
        %s1334 = scalar_lea.sflag [#allocation6], %s1333
        %s1335 = sand.u32 %s181, 1
        %s1336 = smul.addr %s1335, 8
        %s1337 = scalar_lea.vmem [#allocation5], %s1336
        // Predicated region
        $region49: #{tpu_custom_call.1} parent=47 // pred_check
          %p1338 = pneg %p191
        $region50: #{tpu_custom_call.1} parent=47 // pred_check_branch
          %1340 = sbr.rel (%p1338) target = $region52
        $region51: #{tpu_custom_call.1} parent=47 // pred_region
          %s1342 = ssub.s32 128, 128
          %1343 = vsyncadd %s1334, %s1342
          %s1344 = smul.addr %s21, 128
          %s1345 = scalar_lea.hbm %s7, %s1344
          %s1347 = sshll.u32 %s1337, 4
          %s1348 = int_to_ptr.vmem [resolvable:$true] %s1347
          %1350 = dma.vmem_to_hbm [thread:$0]  %s1348, 128, %s1345, %s1334
        $region52: #{tpu_custom_call.1} parent=47 // pred_fallthru
          _
      $region48: #{tpu_custom_call.1} parent=5 // pred_fallthru
        _
      %p1351 = scmp.le.s32.totalorder 2, %s16
      // Predicated region
      $region53: #{tpu_custom_call.1} parent=5 // pred_check
        %p1352 = pneg %p1351
      $region54: #{tpu_custom_call.1} parent=5 // pred_check_branch
        %1354 = sbr.rel (%p1352) target = $region56
      $region55: #{tpu_custom_call.1} parent=5 // pred_region
        %s1355 = ssub.s32 %s16, 2
        // Predicated region
        $region57: #{tpu_custom_call.1} parent=55 // pred_check
          %p1356 = pneg %p197
        $region58: #{tpu_custom_call.1} parent=55 // pred_check_branch
          %1358 = sbr.rel (%p1356) target = $region60
        $region59: #{tpu_custom_call.1} parent=55 // pred_region
          %s1359 = sand.u32 %s182, 1
          %s1360 = scalar_lea.sflag [#allocation6], %s1359
          %s1361 = sand.u32 %s182, 1
          %s1362 = smul.addr %s1361, 8
          %s1363 = scalar_lea.vmem [#allocation5], %s1362
          %1364 = dma.done %s1360, 128
        $region60: #{tpu_custom_call.1} parent=55 // pred_fallthru
          _
      $region56: #{tpu_custom_call.1} parent=5 // pred_fallthru
        _
    $region6: #{tpu_custom_call.1} parent=1 // loop_footer
      %s20 = sadd.s32 1, %s16
    $region7: #{tpu_custom_call.1} parent=1 // loop_footer_branch
      %15 = sbr.rel target = $region3
    $region8: #{tpu_custom_call.1} parent=1 // loop_exit
      _
    %1365 = vsyncpa [#allocation6], 1
    %s1366 = scalar_lea.sflag [#allocation6], 1
    %1367 = vsyncpa %s1366, 1

</llo_original>
